<compile_context>
chip_gen: v7x
topology: tpu7x:2x2x1
jax: 0.10.0
libtpu: 0.0.40
codegen_flags: <defaults>
</compile_context>

<pallas_src>
import functools
import math

import jax
import jax.numpy as jnp
from jax.experimental import pallas as pl
from jax.experimental.pallas import tpu as pltpu


# ----------------------------------------------------------------------------
# Fused kernel: one grid step = (batch tile b, contextualizer block l).
# ----------------------------------------------------------------------------
def _stack_kernel(num_heads,
                  idx_ref, tab_ref,
                  wqkv_ref, bqkv_ref, wo_ref, bo_ref,
                  w1_ref, b1_ref, w2_ref, b2_ref,
                  out_ref,
                  act_ref, onehot_ref):
    l = pl.program_id(1)
    num_blocks = pl.num_programs(1)

    TB, S, E = act_ref.shape
    C = tab_ref.shape[1]
    M = w1_ref.shape[2]
    H = num_heads
    d = E // H
    n = TB * S

    # ---- once per batch tile: init bf16 carry and cache the one-hot selector ----
    @pl.when(l == 0)
    def _():
        idx = idx_ref[...]                                       # (TB, S, 1) int32
        # Block-0 input: the reference's `x` interpreted as float(idx) broadcast to E.
        act_ref[...] = jnp.broadcast_to(idx.astype(jnp.bfloat16), (TB, S, E))
        iota_c = jax.lax.broadcasted_iota(jnp.int32, (TB, S, C), 2)
        onehot_ref[...] = (idx == iota_c).astype(jnp.bfloat16).reshape(n, C)

    # In-kernel class-embedding lookup (original indices reused for every block):
    # cached one-hot (n, C) @ per-block table (C, E) on the MXU.
    emb = jnp.dot(onehot_ref[...], tab_ref[0],
                  preferred_element_type=jnp.float32)            # (n, E) f32

    h = act_ref[...].reshape(n, E).astype(jnp.float32) + emb     # "x += class_embedding(x)"
    hb = h.astype(jnp.bfloat16)

    # Fused QKV projection: single (n, E) @ (E, 3E) bf16 matmul, f32 accumulate.
    # (1/sqrt(d) already folded into the Q columns host-side.)
    qkv = jnp.dot(hb, wqkv_ref[0], preferred_element_type=jnp.float32) + bqkv_ref[0]
    q = qkv[:, :E].reshape(TB, S, E).astype(jnp.bfloat16)
    k = qkv[:, E:2 * E].reshape(TB, S, E).astype(jnp.bfloat16)
    v = qkv[:, 2 * E:].reshape(TB, S, E).astype(jnp.bfloat16)

    # Attention: per head, batched over the TB rows of the tile.  Softmax stays in
    # f32; normalization is deferred until after the PV matmul (per-row reciprocal
    # applied to the (TB,S,d) output instead of the (TB,S,S) probabilities).
    # TODO(synk): for d < 128 the per-head lane slices imply relayouts; a host-side
    # head-major weight permutation + one (TB*H)-batched einsum would remove them.
    heads = []
    for hd in range(H):
        sl = slice(hd * d, (hd + 1) * d)
        s = jnp.einsum('bqd,bkd->bqk', q[:, :, sl], k[:, :, sl],
                       preferred_element_type=jnp.float32)       # (TB, S, S)
        m = jnp.max(s, axis=-1, keepdims=True)
        p = jnp.exp(s - m)
        r = pl.reciprocal(jnp.sum(p, axis=-1, keepdims=True), approx=True)  # (TB,S,1)
        pv = jnp.einsum('bqk,bkd->bqd', p.astype(jnp.bfloat16), v[:, :, sl],
                        preferred_element_type=jnp.float32)      # (TB, S, d)
        heads.append(pv * r)

    o = jnp.concatenate(heads, axis=-1).reshape(n, E).astype(jnp.bfloat16)
    attn = jnp.dot(o, wo_ref[0], preferred_element_type=jnp.float32) + bo_ref[0]

    # MLP first half: Linear -> ReLU (no residual in the reference block).
    y = jnp.maximum(jnp.dot(attn.astype(jnp.bfloat16), w1_ref[0],
                            preferred_element_type=jnp.float32) + b1_ref[0], 0.0)  # (n, M)

    # Intermediate blocks: finish the MLP and carry bf16 activation to next block.
    @pl.when(l < num_blocks - 1)
    def _():
        z = jnp.dot(y.astype(jnp.bfloat16), w2_ref[0],
                    preferred_element_type=jnp.float32) + b2_ref[0]
        act_ref[...] = z.reshape(TB, S, E).astype(jnp.bfloat16)

    # Last block: torch.mean(x, dim=1) commutes with the final Linear -> reduce the
    # ReLU output over S first, then project (TB,M)@(M,E); no carry store needed.
    @pl.when(l == num_blocks - 1)
    def _():
        ym = jnp.mean(y.reshape(TB, S, M), axis=1)               # (TB, M) f32
        out_ref[0] = jnp.dot(ym.astype(jnp.bfloat16), w2_ref[0],
                             preferred_element_type=jnp.float32) + b2_ref[0]


# ----------------------------------------------------------------------------
# Wrapper
# ----------------------------------------------------------------------------
def _pick_batch_tile(batch, seq, embed, mlp_dim, num_classes,
                     weight_bytes_per_block, vmem_budget=44 << 20):
    """Largest divisor of `batch` whose VMEM footprint (double-buffered per-block
    weights + scratches + f32 transients) fits `vmem_budget`; prefer exactly two
    batch tiles (one per v7x TensorCore), else >= 2, else the largest that fits."""
    fixed = 2 * weight_bytes_per_block            # l-axis double-buffered weight stream

    def tile_bytes(tb):
        n = tb * seq
        scr = n * embed * 2 + n * num_classes * 2                 # bf16 carry + one-hot
        io = 2 * (n * 4) + 2 * (tb * embed * 4)                   # idx in, mean out
        trans = (n * 3 * embed            # qkv f32
                 + 3 * n * embed          # q/k/v bf16-ish reshapes + attn/o f32
                 + tb * seq * seq         # per-head scores f32
                 + n * mlp_dim) * 4       # mlp hidden f32
        return scr + io + trans

    divisors = [t for t in range(1, batch + 1) if batch % t == 0]
    fitting = [t for t in divisors if fixed + tile_bytes(t) <= vmem_budget] or [1]
    exact2 = [t for t in fitting if batch // t == 2]
    if exact2:
        return max(exact2)
    multi = [t for t in fitting if batch // t >= 2]
    return max(multi) if multi else max(fitting)


def contextual_aggregator(idx, params, num_heads, embed_dim, batch_tile=None):
    B, S = idx.shape
    E = embed_dim
    L = len(params)
    assert E % num_heads == 0, "embed_dim must be divisible by num_heads"

    C = params[0]['emb_table'].shape[0]
    M = params[0]['w1'].shape[1]
    d = E // num_heads
    scale = 1.0 / math.sqrt(d)

    # Per-block bf16 weight bytes (tab + qkv + wo + w1 + w2) + f32 biases.
    wbytes = 2 * (C * E + 3 * E * E + E * E + 2 * E * M) + 4 * (3 * E + E + M + E)
    TB = batch_tile if batch_tile is not None else _pick_batch_tile(
        B, S, E, M, C, wbytes)
    assert B % TB == 0

    # Stack per-block parameters along a leading block axis; matmul operands in bf16
    # (MXU-native, halves weight DMA / VMEM), biases stay f32 for the accumulators.
    def stack(name, dtype):
        return jnp.stack([p[name] for p in params]).astype(dtype)

    tabs = stack('emb_table', jnp.bfloat16)                              # (L, C, E)
    # Fold 1/sqrt(d) into the Q columns (weights AND bias) host-side.
    wqkv = jnp.stack([jnp.concatenate([p['wq'] * scale, p['wk'], p['wv']], axis=1)
                      for p in params]).astype(jnp.bfloat16)             # (L, E, 3E)
    bqkv = jnp.stack([jnp.concatenate([p['bq'] * scale, p['bk'], p['bv']], axis=1)
                      for p in params]).astype(jnp.float32)              # (L, 1, 3E)
    wo, bo = stack('wo', jnp.bfloat16), stack('bo', jnp.float32)
    w1, b1 = stack('w1', jnp.bfloat16), stack('b1', jnp.float32)
    w2, b2 = stack('w2', jnp.bfloat16), stack('b2', jnp.float32)

    idx3 = idx.astype(jnp.int32)[..., None]                              # (B, S, 1)

    def wspec(arr):   # per-block weight/bias: select block l, full tile otherwise
        return pl.BlockSpec((1,) + arr.shape[1:], lambda b, l: (l, 0, 0))

    out = pl.pallas_call(
        functools.partial(_stack_kernel, num_heads),
        out_shape=jax.ShapeDtypeStruct((B // TB, TB, E), jnp.float32),
        grid=(B // TB, L),                                  # block axis innermost
        in_specs=[
            pl.BlockSpec((TB, S, 1), lambda b, l: (b, 0, 0)),            # idx
            wspec(tabs), wspec(wqkv), wspec(bqkv), wspec(wo), wspec(bo),
            wspec(w1), wspec(b1), wspec(w2), wspec(b2),
        ],
        out_specs=pl.BlockSpec((1, TB, E), lambda b, l: (b, 0, 0)),
        scratch_shapes=[
            pltpu.VMEM((TB, S, E), jnp.bfloat16),      # bf16 activation carry across blocks
            pltpu.VMEM((TB * S, C), jnp.bfloat16),     # cached one-hot embedding selector
        ],
        compiler_params=pltpu.CompilerParams(
            dimension_semantics=("parallel", "arbitrary"),
            vmem_limit_bytes=56 * 1024 * 1024,  # headroom within v7x 64 MiB physical VMEM
        ),
    )(idx3, tabs, wqkv, bqkv, wo, bo, w1, b1, w2, b2)

    return out.reshape(B, E)


# ----------------------------------------------------------------------------
# Parameter init (deterministic, synthetic) + pure-JAX f32 reference.
# ----------------------------------------------------------------------------
def init_params(key, embed_dim, num_classes, num_heads, mlp_dim, num_blocks):
    params = []
    for b in range(num_blocks):
        keys = jax.random.split(jax.random.fold_in(key, b), 7)

        def w(k, shape, s=0.02):
            return jax.random.normal(k, shape, jnp.float32) * s

        params.append(dict(
            emb_table=w(keys[0], (num_classes, embed_dim), 0.1),
            wq=w(keys[1], (embed_dim, embed_dim)),
            wk=w(keys[2], (embed_dim, embed_dim)),
            wv=w(keys[3], (embed_dim, embed_dim)),
            wo=w(keys[4], (embed_dim, embed_dim)),
            w1=w(keys[5], (embed_dim, mlp_dim)),
            w2=w(keys[6], (mlp_dim, embed_dim)),
            bq=jnp.zeros((1, embed_dim), jnp.float32),
            bk=jnp.zeros((1, embed_dim), jnp.float32),
            bv=jnp.zeros((1, embed_dim), jnp.float32),
            bo=jnp.zeros((1, embed_dim), jnp.float32),
            b1=jnp.zeros((1, mlp_dim), jnp.float32),
            b2=jnp.zeros((1, embed_dim), jnp.float32),
        ))
    return params


def _reference_forward(idx, params, num_heads):
    """Pure-JAX f32 reference mirroring the kernel's documented semantics."""
    E = params[0]['wq'].shape[0]
    B, S = idx.shape
    d = E // num_heads
    x = jnp.broadcast_to(idx[..., None].astype(jnp.float32), (B, S, E))
    for p in params:
        h = x + jnp.take(p['emb_table'], idx, axis=0)
        q = h @ p['wq'] + p['bq']
        k = h @ p['wk'] + p['bk']
        v = h @ p['wv'] + p['bv']
        outs = []
        for hd in range(num_heads):
            sl = slice(hd * d, (hd + 1) * d)
            s = jnp.einsum('bqd,bkd->bqk', q[..., sl], k[..., sl]) / math.sqrt(d)
            a = jax.nn.softmax(s, axis=-1)
            outs.append(jnp.einsum('bqk,bkd->bqd', a, v[..., sl]))
        attn = jnp.concatenate(outs, axis=-1) @ p['wo'] + p['bo']
        y = jnp.maximum(attn @ p['w1'] + p['b1'], 0.0)
        x = y @ p['w2'] + p['b2']
    return jnp.mean(x, axis=1)


if __name__ == "__main__":
    B, S = 2, 8
    embed_dim, num_classes, num_heads, mlp_dim, num_blocks = 32, 16, 4, 64, 2

    key = jax.random.PRNGKey(0)
    k_idx, k_par = jax.random.split(key)
    idx = jax.random.randint(k_idx, (B, S), 0, num_classes, dtype=jnp.int32)
    params = init_params(k_par, embed_dim, num_classes, num_heads, mlp_dim, num_blocks)

    fwd = jax.jit(functools.partial(contextual_aggregator,
                                    num_heads=num_heads, embed_dim=embed_dim))
    out = jax.block_until_ready(fwd(idx, params))
    assert out.shape == (B, embed_dim) and out.dtype == jnp.float32

    ref = jax.block_until_ready(_reference_forward(idx, params, num_heads))
    assert jnp.allclose(out, ref, rtol=1e-1, atol=2e-2), \
        f"max abs diff {float(jnp.max(jnp.abs(out - ref)))}"

    print("KERNEL_OK")
</pallas_src>

<mosaic_0001>
module attributes {stable_mosaic.version = 11 : i64} {
  func.func @_stack_kernel(%arg0: i32, %arg1: i32, %arg2: memref<1x8x1xi32, #tpu.memory_space<vmem>>, %arg3: memref<1x16x32xbf16, #tpu.memory_space<vmem>>, %arg4: memref<1x32x96xbf16, #tpu.memory_space<vmem>>, %arg5: memref<1x1x96xf32, #tpu.memory_space<vmem>>, %arg6: memref<1x32x32xbf16, #tpu.memory_space<vmem>>, %arg7: memref<1x1x32xf32, #tpu.memory_space<vmem>>, %arg8: memref<1x32x64xbf16, #tpu.memory_space<vmem>>, %arg9: memref<1x1x64xf32, #tpu.memory_space<vmem>>, %arg10: memref<1x64x32xbf16, #tpu.memory_space<vmem>>, %arg11: memref<1x1x32xf32, #tpu.memory_space<vmem>>, %arg12: memref<1x1x32xf32, #tpu.memory_space<vmem>>, %arg13: memref<1x8x32xbf16, #tpu.memory_space<vmem>>, %arg14: memref<8x16xbf16, #tpu.memory_space<vmem>>) attributes {dimension_semantics = [#tpu.dimension_semantics<parallel>, #tpu.dimension_semantics<arbitrary>], iteration_bounds = array<i64: 2, 2>, scalar_prefetch = 0 : i64, scratch_operands = 2 : i64, tpu.core_type = #tpu.core_type<tc>, window_params = [{transform_indices = @transform_0, window_bounds = array<i64: 1, 8, 1>}, {transform_indices = @transform_1, window_bounds = array<i64: 1, 16, 32>}, {transform_indices = @transform_2, window_bounds = array<i64: 1, 32, 96>}, {transform_indices = @transform_3, window_bounds = array<i64: 1, 1, 96>}, {transform_indices = @transform_4, window_bounds = array<i64: 1, 32, 32>}, {transform_indices = @transform_5, window_bounds = array<i64: 1, 1, 32>}, {transform_indices = @transform_6, window_bounds = array<i64: 1, 32, 64>}, {transform_indices = @transform_7, window_bounds = array<i64: 1, 1, 64>}, {transform_indices = @transform_8, window_bounds = array<i64: 1, 64, 32>}, {transform_indices = @transform_9, window_bounds = array<i64: 1, 1, 32>}, {transform_indices = @transform_10, window_bounds = array<i64: 1, 1, 32>}]} {
    %c0_i32 = arith.constant 0 : i32
    %0 = arith.cmpi eq, %arg1, %c0_i32 : i32
    %1 = arith.extui %0 : i1 to i32
    %c0_i32_0 = arith.constant 0 : i32
    %2 = arith.cmpi ne, %1, %c0_i32_0 : i32
    scf.if %2 {
      %c0_49 = arith.constant 0 : index
      %c0_50 = arith.constant 0 : index
      %c0_51 = arith.constant 0 : index
      %118 = vector.load %arg2[%c0_49, %c0_50, %c0_51] : memref<1x8x1xi32, #tpu.memory_space<vmem>>, vector<1x8x1xi32>
      %119 = arith.sitofp %118 : vector<1x8x1xi32> to vector<1x8x1xbf16>
      %120 = vector.shape_cast %119 : vector<1x8x1xbf16> to vector<1x8x1xbf16>
      %121 = vector.broadcast %120 : vector<1x8x1xbf16> to vector<1x8x32xbf16>
      %c0_52 = arith.constant 0 : index
      %c0_53 = arith.constant 0 : index
      %c0_54 = arith.constant 0 : index
      %122 = vector.load %arg13[%c0_52, %c0_53, %c0_54] : memref<1x8x32xbf16, #tpu.memory_space<vmem>>, vector<1x8x32xbf16>
      tpu.vector_store %arg13[%c0_52, %c0_53, %c0_54], %121 {strides = array<i32>} : memref<1x8x32xbf16, #tpu.memory_space<vmem>>, vector<1x8x32xbf16>,
      %123 = tpu.iota {dimensions = array<i32: 2>} : vector<1x8x16xi32>
      %124 = vector.broadcast %118 : vector<1x8x1xi32> to vector<1x8x16xi32>
      %125 = arith.cmpi eq, %124, %123 : vector<1x8x16xi32>
      %126 = arith.extui %125 : vector<1x8x16xi1> to vector<1x8x16xi32>
      %127 = arith.sitofp %126 : vector<1x8x16xi32> to vector<1x8x16xf32>
      %128 = arith.truncf %127 : vector<1x8x16xf32> to vector<1x8x16xbf16>
      %129 = vector.shape_cast %128 : vector<1x8x16xbf16> to vector<8x16xbf16>
      %c0_55 = arith.constant 0 : index
      %c0_56 = arith.constant 0 : index
      %130 = vector.load %arg14[%c0_55, %c0_56] : memref<8x16xbf16, #tpu.memory_space<vmem>>, vector<8x16xbf16>
      tpu.vector_store %arg14[%c0_55, %c0_56], %129 {strides = array<i32>} : memref<8x16xbf16, #tpu.memory_space<vmem>>, vector<8x16xbf16>,
    } else {
    }
    %c0 = arith.constant 0 : index
    %c0_1 = arith.constant 0 : index
    %3 = vector.load %arg14[%c0, %c0_1] : memref<8x16xbf16, #tpu.memory_space<vmem>>, vector<8x16xbf16>
    %c0_2 = arith.constant 0 : index
    %c0_3 = arith.constant 0 : index
    %c0_4 = arith.constant 0 : index
    %4 = vector.load %arg3[%c0_2, %c0_3, %c0_4] : memref<1x16x32xbf16, #tpu.memory_space<vmem>>, vector<1x16x32xbf16>
    %5 = vector.shape_cast %4 : vector<1x16x32xbf16> to vector<16x32xbf16>
    %cst = arith.constant dense<0.000000e+00> : vector<8x32xf32>
    %6 = tpu.matmul %3, %5, %cst {dimension_numbers = #tpu.dot_dimension_numbers<[1], [0], [0], [1], [0, 0, 1, 1], [], []>} : vector<8x16xbf16>, vector<16x32xbf16>, vector<8x32xf32> -> vector<8x32xf32>
    %c0_5 = arith.constant 0 : index
    %c0_6 = arith.constant 0 : index
    %c0_7 = arith.constant 0 : index
    %7 = vector.load %arg13[%c0_5, %c0_6, %c0_7] : memref<1x8x32xbf16, #tpu.memory_space<vmem>>, vector<1x8x32xbf16>
    %8 = vector.shape_cast %7 : vector<1x8x32xbf16> to vector<8x32xbf16>
    %9 = arith.extf %8 : vector<8x32xbf16> to vector<8x32xf32>
    %10 = arith.addf %9, %6 : vector<8x32xf32>
    %11 = arith.truncf %10 : vector<8x32xf32> to vector<8x32xbf16>
    %c0_8 = arith.constant 0 : index
    %c0_9 = arith.constant 0 : index
    %c0_10 = arith.constant 0 : index
    %12 = vector.load %arg4[%c0_8, %c0_9, %c0_10] : memref<1x32x96xbf16, #tpu.memory_space<vmem>>, vector<1x32x96xbf16>
    %13 = vector.shape_cast %12 : vector<1x32x96xbf16> to vector<32x96xbf16>
    %cst_11 = arith.constant dense<0.000000e+00> : vector<8x96xf32>
    %14 = tpu.matmul %11, %13, %cst_11 {dimension_numbers = #tpu.dot_dimension_numbers<[1], [0], [0], [1], [0, 0, 1, 1], [], []>} : vector<8x32xbf16>, vector<32x96xbf16>, vector<8x96xf32> -> vector<8x96xf32>
    %c0_12 = arith.constant 0 : index
    %c0_13 = arith.constant 0 : index
    %c0_14 = arith.constant 0 : index
    %15 = vector.load %arg5[%c0_12, %c0_13, %c0_14] : memref<1x1x96xf32, #tpu.memory_space<vmem>>, vector<1x1x96xf32>
    %16 = vector.shape_cast %15 : vector<1x1x96xf32> to vector<1x96xf32>
    %17 = vector.broadcast %16 : vector<1x96xf32> to vector<8x96xf32>
    %18 = arith.addf %14, %17 : vector<8x96xf32>
    %19 = vector.extract_strided_slice %18 {offsets = [0, 0], sizes = [8, 32], strides = [1, 1]} : vector<8x96xf32> to vector<8x32xf32>
    %20 = vector.shape_cast %19 : vector<8x32xf32> to vector<1x8x32xf32>
    %21 = arith.truncf %20 : vector<1x8x32xf32> to vector<1x8x32xbf16>
    %22 = vector.extract_strided_slice %18 {offsets = [0, 32], sizes = [8, 32], strides = [1, 1]} : vector<8x96xf32> to vector<8x32xf32>
    %23 = vector.shape_cast %22 : vector<8x32xf32> to vector<1x8x32xf32>
    %24 = arith.truncf %23 : vector<1x8x32xf32> to vector<1x8x32xbf16>
    %25 = vector.extract_strided_slice %18 {offsets = [0, 64], sizes = [8, 32], strides = [1, 1]} : vector<8x96xf32> to vector<8x32xf32>
    %26 = vector.shape_cast %25 : vector<8x32xf32> to vector<1x8x32xf32>
    %27 = arith.truncf %26 : vector<1x8x32xf32> to vector<1x8x32xbf16>
    %28 = vector.extract_strided_slice %21 {offsets = [0, 0, 0], sizes = [1, 8, 8], strides = [1, 1, 1]} : vector<1x8x32xbf16> to vector<1x8x8xbf16>
    %29 = vector.extract_strided_slice %24 {offsets = [0, 0, 0], sizes = [1, 8, 8], strides = [1, 1, 1]} : vector<1x8x32xbf16> to vector<1x8x8xbf16>
    "tpu.trace_start"() <{level = 10 : i32, message = "bqd,bkd->bqk"}> : () -> ()
    %cst_15 = arith.constant dense<0.000000e+00> : vector<1x8x8xf32>
    %30 = tpu.matmul %28, %29, %cst_15 {dimension_numbers = #tpu.dot_dimension_numbers<[2], [2], [1], [1], [0, 0, 0, 1, 1, 1], [0], [0]>} : vector<1x8x8xbf16>, vector<1x8x8xbf16>, vector<1x8x8xf32> -> vector<1x8x8xf32>
    "tpu.trace_stop"() : () -> ()
    %cst_16 = arith.constant dense<0xFF800000> : vector<1x8xf32>
    %31 = vector.multi_reduction <maximumf>, %30, %cst_16 [2] : vector<1x8x8xf32> to vector<1x8xf32>
    %32 = vector.shape_cast %31 : vector<1x8xf32> to vector<1x8x1xf32>
    %33 = vector.broadcast %32 : vector<1x8x1xf32> to vector<1x8x8xf32>
    %34 = arith.subf %30, %33 : vector<1x8x8xf32>
    %35 = math.exp %34 : vector<1x8x8xf32>
    %cst_17 = arith.constant dense<0.000000e+00> : vector<1x8xf32>
    %36 = vector.multi_reduction <add>, %35, %cst_17 [2] : vector<1x8x8xf32> to vector<1x8xf32>
    %37 = vector.shape_cast %36 : vector<1x8xf32> to vector<1x8x1xf32>
    %38 = tpu.reciprocal %37 {approx = true} : vector<1x8x1xf32> -> vector<1x8x1xf32>
    %39 = arith.truncf %35 : vector<1x8x8xf32> to vector<1x8x8xbf16>
    %40 = vector.extract_strided_slice %27 {offsets = [0, 0, 0], sizes = [1, 8, 8], strides = [1, 1, 1]} : vector<1x8x32xbf16> to vector<1x8x8xbf16>
    "tpu.trace_start"() <{level = 10 : i32, message = "bqk,bkd->bqd"}> : () -> ()
    %cst_18 = arith.constant dense<0.000000e+00> : vector<1x8x8xf32>
    %41 = tpu.matmul %39, %40, %cst_18 {dimension_numbers = #tpu.dot_dimension_numbers<[2], [1], [1], [2], [0, 0, 0, 1, 1, 2], [0], [0]>} : vector<1x8x8xbf16>, vector<1x8x8xbf16>, vector<1x8x8xf32> -> vector<1x8x8xf32>
    "tpu.trace_stop"() : () -> ()
    %42 = vector.broadcast %38 : vector<1x8x1xf32> to vector<1x8x8xf32>
    %43 = arith.mulf %41, %42 : vector<1x8x8xf32>
    %44 = vector.extract_strided_slice %21 {offsets = [0, 0, 8], sizes = [1, 8, 8], strides = [1, 1, 1]} : vector<1x8x32xbf16> to vector<1x8x8xbf16>
    %45 = vector.extract_strided_slice %24 {offsets = [0, 0, 8], sizes = [1, 8, 8], strides = [1, 1, 1]} : vector<1x8x32xbf16> to vector<1x8x8xbf16>
    "tpu.trace_start"() <{level = 10 : i32, message = "bqd,bkd->bqk"}> : () -> ()
    %cst_19 = arith.constant dense<0.000000e+00> : vector<1x8x8xf32>
    %46 = tpu.matmul %44, %45, %cst_19 {dimension_numbers = #tpu.dot_dimension_numbers<[2], [2], [1], [1], [0, 0, 0, 1, 1, 1], [0], [0]>} : vector<1x8x8xbf16>, vector<1x8x8xbf16>, vector<1x8x8xf32> -> vector<1x8x8xf32>
    "tpu.trace_stop"() : () -> ()
    %cst_20 = arith.constant dense<0xFF800000> : vector<1x8xf32>
    %47 = vector.multi_reduction <maximumf>, %46, %cst_20 [2] : vector<1x8x8xf32> to vector<1x8xf32>
    %48 = vector.shape_cast %47 : vector<1x8xf32> to vector<1x8x1xf32>
    %49 = vector.broadcast %48 : vector<1x8x1xf32> to vector<1x8x8xf32>
    %50 = arith.subf %46, %49 : vector<1x8x8xf32>
    %51 = math.exp %50 : vector<1x8x8xf32>
    %cst_21 = arith.constant dense<0.000000e+00> : vector<1x8xf32>
    %52 = vector.multi_reduction <add>, %51, %cst_21 [2] : vector<1x8x8xf32> to vector<1x8xf32>
    %53 = vector.shape_cast %52 : vector<1x8xf32> to vector<1x8x1xf32>
    %54 = tpu.reciprocal %53 {approx = true} : vector<1x8x1xf32> -> vector<1x8x1xf32>
    %55 = arith.truncf %51 : vector<1x8x8xf32> to vector<1x8x8xbf16>
    %56 = vector.extract_strided_slice %27 {offsets = [0, 0, 8], sizes = [1, 8, 8], strides = [1, 1, 1]} : vector<1x8x32xbf16> to vector<1x8x8xbf16>
    "tpu.trace_start"() <{level = 10 : i32, message = "bqk,bkd->bqd"}> : () -> ()
    %cst_22 = arith.constant dense<0.000000e+00> : vector<1x8x8xf32>
    %57 = tpu.matmul %55, %56, %cst_22 {dimension_numbers = #tpu.dot_dimension_numbers<[2], [1], [1], [2], [0, 0, 0, 1, 1, 2], [0], [0]>} : vector<1x8x8xbf16>, vector<1x8x8xbf16>, vector<1x8x8xf32> -> vector<1x8x8xf32>
    "tpu.trace_stop"() : () -> ()
    %58 = vector.broadcast %54 : vector<1x8x1xf32> to vector<1x8x8xf32>
    %59 = arith.mulf %57, %58 : vector<1x8x8xf32>
    %60 = vector.extract_strided_slice %21 {offsets = [0, 0, 16], sizes = [1, 8, 8], strides = [1, 1, 1]} : vector<1x8x32xbf16> to vector<1x8x8xbf16>
    %61 = vector.extract_strided_slice %24 {offsets = [0, 0, 16], sizes = [1, 8, 8], strides = [1, 1, 1]} : vector<1x8x32xbf16> to vector<1x8x8xbf16>
    "tpu.trace_start"() <{level = 10 : i32, message = "bqd,bkd->bqk"}> : () -> ()
    %cst_23 = arith.constant dense<0.000000e+00> : vector<1x8x8xf32>
    %62 = tpu.matmul %60, %61, %cst_23 {dimension_numbers = #tpu.dot_dimension_numbers<[2], [2], [1], [1], [0, 0, 0, 1, 1, 1], [0], [0]>} : vector<1x8x8xbf16>, vector<1x8x8xbf16>, vector<1x8x8xf32> -> vector<1x8x8xf32>
    "tpu.trace_stop"() : () -> ()
    %cst_24 = arith.constant dense<0xFF800000> : vector<1x8xf32>
    %63 = vector.multi_reduction <maximumf>, %62, %cst_24 [2] : vector<1x8x8xf32> to vector<1x8xf32>
    %64 = vector.shape_cast %63 : vector<1x8xf32> to vector<1x8x1xf32>
    %65 = vector.broadcast %64 : vector<1x8x1xf32> to vector<1x8x8xf32>
    %66 = arith.subf %62, %65 : vector<1x8x8xf32>
    %67 = math.exp %66 : vector<1x8x8xf32>
    %cst_25 = arith.constant dense<0.000000e+00> : vector<1x8xf32>
    %68 = vector.multi_reduction <add>, %67, %cst_25 [2] : vector<1x8x8xf32> to vector<1x8xf32>
    %69 = vector.shape_cast %68 : vector<1x8xf32> to vector<1x8x1xf32>
    %70 = tpu.reciprocal %69 {approx = true} : vector<1x8x1xf32> -> vector<1x8x1xf32>
    %71 = arith.truncf %67 : vector<1x8x8xf32> to vector<1x8x8xbf16>
    %72 = vector.extract_strided_slice %27 {offsets = [0, 0, 16], sizes = [1, 8, 8], strides = [1, 1, 1]} : vector<1x8x32xbf16> to vector<1x8x8xbf16>
    "tpu.trace_start"() <{level = 10 : i32, message = "bqk,bkd->bqd"}> : () -> ()
    %cst_26 = arith.constant dense<0.000000e+00> : vector<1x8x8xf32>
    %73 = tpu.matmul %71, %72, %cst_26 {dimension_numbers = #tpu.dot_dimension_numbers<[2], [1], [1], [2], [0, 0, 0, 1, 1, 2], [0], [0]>} : vector<1x8x8xbf16>, vector<1x8x8xbf16>, vector<1x8x8xf32> -> vector<1x8x8xf32>
    "tpu.trace_stop"() : () -> ()
    %74 = vector.broadcast %70 : vector<1x8x1xf32> to vector<1x8x8xf32>
    %75 = arith.mulf %73, %74 : vector<1x8x8xf32>
    %76 = vector.extract_strided_slice %21 {offsets = [0, 0, 24], sizes = [1, 8, 8], strides = [1, 1, 1]} : vector<1x8x32xbf16> to vector<1x8x8xbf16>
    %77 = vector.extract_strided_slice %24 {offsets = [0, 0, 24], sizes = [1, 8, 8], strides = [1, 1, 1]} : vector<1x8x32xbf16> to vector<1x8x8xbf16>
    "tpu.trace_start"() <{level = 10 : i32, message = "bqd,bkd->bqk"}> : () -> ()
    %cst_27 = arith.constant dense<0.000000e+00> : vector<1x8x8xf32>
    %78 = tpu.matmul %76, %77, %cst_27 {dimension_numbers = #tpu.dot_dimension_numbers<[2], [2], [1], [1], [0, 0, 0, 1, 1, 1], [0], [0]>} : vector<1x8x8xbf16>, vector<1x8x8xbf16>, vector<1x8x8xf32> -> vector<1x8x8xf32>
    "tpu.trace_stop"() : () -> ()
    %cst_28 = arith.constant dense<0xFF800000> : vector<1x8xf32>
    %79 = vector.multi_reduction <maximumf>, %78, %cst_28 [2] : vector<1x8x8xf32> to vector<1x8xf32>
    %80 = vector.shape_cast %79 : vector<1x8xf32> to vector<1x8x1xf32>
    %81 = vector.broadcast %80 : vector<1x8x1xf32> to vector<1x8x8xf32>
    %82 = arith.subf %78, %81 : vector<1x8x8xf32>
    %83 = math.exp %82 : vector<1x8x8xf32>
    %cst_29 = arith.constant dense<0.000000e+00> : vector<1x8xf32>
    %84 = vector.multi_reduction <add>, %83, %cst_29 [2] : vector<1x8x8xf32> to vector<1x8xf32>
    %85 = vector.shape_cast %84 : vector<1x8xf32> to vector<1x8x1xf32>
    %86 = tpu.reciprocal %85 {approx = true} : vector<1x8x1xf32> -> vector<1x8x1xf32>
    %87 = arith.truncf %83 : vector<1x8x8xf32> to vector<1x8x8xbf16>
    %88 = vector.extract_strided_slice %27 {offsets = [0, 0, 24], sizes = [1, 8, 8], strides = [1, 1, 1]} : vector<1x8x32xbf16> to vector<1x8x8xbf16>
    "tpu.trace_start"() <{level = 10 : i32, message = "bqk,bkd->bqd"}> : () -> ()
    %cst_30 = arith.constant dense<0.000000e+00> : vector<1x8x8xf32>
    %89 = tpu.matmul %87, %88, %cst_30 {dimension_numbers = #tpu.dot_dimension_numbers<[2], [1], [1], [2], [0, 0, 0, 1, 1, 2], [0], [0]>} : vector<1x8x8xbf16>, vector<1x8x8xbf16>, vector<1x8x8xf32> -> vector<1x8x8xf32>
    "tpu.trace_stop"() : () -> ()
    %90 = vector.broadcast %86 : vector<1x8x1xf32> to vector<1x8x8xf32>
    %91 = arith.mulf %89, %90 : vector<1x8x8xf32>
    %92 = tpu.concatenate %43, %59, %75, %91 in 2 : vector<1x8x8xf32>, vector<1x8x8xf32>, vector<1x8x8xf32>, vector<1x8x8xf32> -> vector<1x8x32xf32>
    %93 = vector.shape_cast %92 : vector<1x8x32xf32> to vector<8x32xf32>
    %94 = arith.truncf %93 : vector<8x32xf32> to vector<8x32xbf16>
    %c0_31 = arith.constant 0 : index
    %c0_32 = arith.constant 0 : index
    %c0_33 = arith.constant 0 : index
    %95 = vector.load %arg6[%c0_31, %c0_32, %c0_33] : memref<1x32x32xbf16, #tpu.memory_space<vmem>>, vector<1x32x32xbf16>
    %96 = vector.shape_cast %95 : vector<1x32x32xbf16> to vector<32x32xbf16>
    %cst_34 = arith.constant dense<0.000000e+00> : vector<8x32xf32>
    %97 = tpu.matmul %94, %96, %cst_34 {dimension_numbers = #tpu.dot_dimension_numbers<[1], [0], [0], [1], [0, 0, 1, 1], [], []>} : vector<8x32xbf16>, vector<32x32xbf16>, vector<8x32xf32> -> vector<8x32xf32>
    %c0_35 = arith.constant 0 : index
    %c0_36 = arith.constant 0 : index
    %c0_37 = arith.constant 0 : index
    %98 = vector.load %arg7[%c0_35, %c0_36, %c0_37] : memref<1x1x32xf32, #tpu.memory_space<vmem>>, vector<1x1x32xf32>
    %99 = vector.shape_cast %98 : vector<1x1x32xf32> to vector<1x32xf32>
    %100 = vector.broadcast %99 : vector<1x32xf32> to vector<8x32xf32>
    %101 = arith.addf %97, %100 : vector<8x32xf32>
    %102 = arith.truncf %101 : vector<8x32xf32> to vector<8x32xbf16>
    %c0_38 = arith.constant 0 : index
    %c0_39 = arith.constant 0 : index
    %c0_40 = arith.constant 0 : index
    %103 = vector.load %arg8[%c0_38, %c0_39, %c0_40] : memref<1x32x64xbf16, #tpu.memory_space<vmem>>, vector<1x32x64xbf16>
    %104 = vector.shape_cast %103 : vector<1x32x64xbf16> to vector<32x64xbf16>
    %cst_41 = arith.constant dense<0.000000e+00> : vector<8x64xf32>
    %105 = tpu.matmul %102, %104, %cst_41 {dimension_numbers = #tpu.dot_dimension_numbers<[1], [0], [0], [1], [0, 0, 1, 1], [], []>} : vector<8x32xbf16>, vector<32x64xbf16>, vector<8x64xf32> -> vector<8x64xf32>
    %c0_42 = arith.constant 0 : index
    %c0_43 = arith.constant 0 : index
    %c0_44 = arith.constant 0 : index
    %106 = vector.load %arg9[%c0_42, %c0_43, %c0_44] : memref<1x1x64xf32, #tpu.memory_space<vmem>>, vector<1x1x64xf32>
    %107 = vector.shape_cast %106 : vector<1x1x64xf32> to vector<1x64xf32>
    %108 = vector.broadcast %107 : vector<1x64xf32> to vector<8x64xf32>
    %109 = arith.addf %105, %108 : vector<8x64xf32>
    %cst_45 = arith.constant 0.000000e+00 : f32
    %110 = vector.broadcast %cst_45 : f32 to vector<8x64xf32>
    %111 = arith.maximumf %109, %110 : vector<8x64xf32>
    %c1_i32 = arith.constant 1 : i32
    %112 = arith.cmpi slt, %arg1, %c1_i32 : i32
    %113 = arith.extui %112 : i1 to i32
    %c0_i32_46 = arith.constant 0 : i32
    %114 = arith.cmpi ne, %113, %c0_i32_46 : i32
    scf.if %114 {
      %118 = arith.truncf %111 : vector<8x64xf32> to vector<8x64xbf16>
      %c0_49 = arith.constant 0 : index
      %c0_50 = arith.constant 0 : index
      %c0_51 = arith.constant 0 : index
      %119 = vector.load %arg10[%c0_49, %c0_50, %c0_51] : memref<1x64x32xbf16, #tpu.memory_space<vmem>>, vector<1x64x32xbf16>
      %120 = vector.shape_cast %119 : vector<1x64x32xbf16> to vector<64x32xbf16>
      %cst_52 = arith.constant dense<0.000000e+00> : vector<8x32xf32>
      %121 = tpu.matmul %118, %120, %cst_52 {dimension_numbers = #tpu.dot_dimension_numbers<[1], [0], [0], [1], [0, 0, 1, 1], [], []>} : vector<8x64xbf16>, vector<64x32xbf16>, vector<8x32xf32> -> vector<8x32xf32>
      %c0_53 = arith.constant 0 : index
      %c0_54 = arith.constant 0 : index
      %c0_55 = arith.constant 0 : index
      %122 = vector.load %arg11[%c0_53, %c0_54, %c0_55] : memref<1x1x32xf32, #tpu.memory_space<vmem>>, vector<1x1x32xf32>
      %123 = vector.shape_cast %122 : vector<1x1x32xf32> to vector<1x32xf32>
      %124 = vector.broadcast %123 : vector<1x32xf32> to vector<8x32xf32>
      %125 = arith.addf %121, %124 : vector<8x32xf32>
      %126 = vector.shape_cast %125 : vector<8x32xf32> to vector<1x8x32xf32>
      %127 = arith.truncf %126 : vector<1x8x32xf32> to vector<1x8x32xbf16>
      %c0_56 = arith.constant 0 : index
      %c0_57 = arith.constant 0 : index
      %c0_58 = arith.constant 0 : index
      %128 = vector.load %arg13[%c0_56, %c0_57, %c0_58] : memref<1x8x32xbf16, #tpu.memory_space<vmem>>, vector<1x8x32xbf16>
      tpu.vector_store %arg13[%c0_56, %c0_57, %c0_58], %127 {strides = array<i32>} : memref<1x8x32xbf16, #tpu.memory_space<vmem>>, vector<1x8x32xbf16>,
    } else {
    }
    %c1_i32_47 = arith.constant 1 : i32
    %115 = arith.cmpi eq, %arg1, %c1_i32_47 : i32
    %116 = arith.extui %115 : i1 to i32
    %c0_i32_48 = arith.constant 0 : i32
    %117 = arith.cmpi ne, %116, %c0_i32_48 : i32
    scf.if %117 {
      %118 = vector.shape_cast %111 : vector<8x64xf32> to vector<1x8x64xf32>
      %cst_49 = arith.constant dense<0.000000e+00> : vector<1x64xf32>
      %119 = vector.multi_reduction <add>, %118, %cst_49 [1] : vector<1x8x64xf32> to vector<1x64xf32>
      %cst_50 = arith.constant 8.000000e+00 : f32
      %120 = vector.broadcast %cst_50 : f32 to vector<1x64xf32>
      %121 = arith.divf %119, %120 : vector<1x64xf32>
      %122 = arith.truncf %121 : vector<1x64xf32> to vector<1x64xbf16>
      %c0_51 = arith.constant 0 : index
      %c0_52 = arith.constant 0 : index
      %c0_53 = arith.constant 0 : index
      %123 = vector.load %arg10[%c0_51, %c0_52, %c0_53] : memref<1x64x32xbf16, #tpu.memory_space<vmem>>, vector<1x64x32xbf16>
      %124 = vector.shape_cast %123 : vector<1x64x32xbf16> to vector<64x32xbf16>
      %cst_54 = arith.constant dense<0.000000e+00> : vector<1x32xf32>
      %125 = tpu.matmul %122, %124, %cst_54 {dimension_numbers = #tpu.dot_dimension_numbers<[1], [0], [0], [1], [0, 0, 1, 1], [], []>} : vector<1x64xbf16>, vector<64x32xbf16>, vector<1x32xf32> -> vector<1x32xf32>
      %c0_55 = arith.constant 0 : index
      %c0_56 = arith.constant 0 : index
      %c0_57 = arith.constant 0 : index
      %126 = vector.load %arg11[%c0_55, %c0_56, %c0_57] : memref<1x1x32xf32, #tpu.memory_space<vmem>>, vector<1x1x32xf32>
      %127 = vector.shape_cast %126 : vector<1x1x32xf32> to vector<1x32xf32>
      %128 = arith.addf %125, %127 : vector<1x32xf32>
      %c0_58 = arith.constant 0 : index
      %c0_59 = arith.constant 0 : index
      %c0_60 = arith.constant 0 : index
      %129 = vector.load %arg12[%c0_58, %c0_59, %c0_60] : memref<1x1x32xf32, #tpu.memory_space<vmem>>, vector<1x1x32xf32>
      %130 = vector.shape_cast %129 : vector<1x1x32xf32> to vector<1x32xf32>
      %131 = vector.shape_cast %128 : vector<1x32xf32> to vector<1x1x32xf32>
      tpu.vector_store %arg12[%c0_58, %c0_59, %c0_60], %131 {strides = array<i32>} : memref<1x1x32xf32, #tpu.memory_space<vmem>>, vector<1x1x32xf32>,
    } else {
    }
    return
  }
  func.func @transform_0(%arg0: i32, %arg1: i32) -> (i32, i32, i32) {
    %c0_i32 = arith.constant 0 : i32
    %c0_i32_0 = arith.constant 0 : i32
    %c0_i32_1 = arith.constant 0 : i32
    return %arg0, %c0_i32, %c0_i32_0 : i32, i32, i32
  }
  func.func @transform_1(%arg0: i32, %arg1: i32) -> (i32, i32, i32) {
    %c0_i32 = arith.constant 0 : i32
    %c0_i32_0 = arith.constant 0 : i32
    %c0_i32_1 = arith.constant 0 : i32
    return %arg1, %c0_i32, %c0_i32_0 : i32, i32, i32
  }
  func.func @transform_2(%arg0: i32, %arg1: i32) -> (i32, i32, i32) {
    %c0_i32 = arith.constant 0 : i32
    %c0_i32_0 = arith.constant 0 : i32
    %c0_i32_1 = arith.constant 0 : i32
    return %arg1, %c0_i32, %c0_i32_0 : i32, i32, i32
  }
  func.func @transform_3(%arg0: i32, %arg1: i32) -> (i32, i32, i32) {
    %c0_i32 = arith.constant 0 : i32
    %c0_i32_0 = arith.constant 0 : i32
    %c0_i32_1 = arith.constant 0 : i32
    return %arg1, %c0_i32, %c0_i32_0 : i32, i32, i32
  }
  func.func @transform_4(%arg0: i32, %arg1: i32) -> (i32, i32, i32) {
    %c0_i32 = arith.constant 0 : i32
    %c0_i32_0 = arith.constant 0 : i32
    %c0_i32_1 = arith.constant 0 : i32
    return %arg1, %c0_i32, %c0_i32_0 : i32, i32, i32
  }
  func.func @transform_5(%arg0: i32, %arg1: i32) -> (i32, i32, i32) {
    %c0_i32 = arith.constant 0 : i32
    %c0_i32_0 = arith.constant 0 : i32
    %c0_i32_1 = arith.constant 0 : i32
    return %arg1, %c0_i32, %c0_i32_0 : i32, i32, i32
  }
  func.func @transform_6(%arg0: i32, %arg1: i32) -> (i32, i32, i32) {
    %c0_i32 = arith.constant 0 : i32
    %c0_i32_0 = arith.constant 0 : i32
    %c0_i32_1 = arith.constant 0 : i32
    return %arg1, %c0_i32, %c0_i32_0 : i32, i32, i32
  }
  func.func @transform_7(%arg0: i32, %arg1: i32) -> (i32, i32, i32) {
    %c0_i32 = arith.constant 0 : i32
    %c0_i32_0 = arith.constant 0 : i32
    %c0_i32_1 = arith.constant 0 : i32
    return %arg1, %c0_i32, %c0_i32_0 : i32, i32, i32
  }
  func.func @transform_8(%arg0: i32, %arg1: i32) -> (i32, i32, i32) {
    %c0_i32 = arith.constant 0 : i32
    %c0_i32_0 = arith.constant 0 : i32
    %c0_i32_1 = arith.constant 0 : i32
    return %arg1, %c0_i32, %c0_i32_0 : i32, i32, i32
  }
  func.func @transform_9(%arg0: i32, %arg1: i32) -> (i32, i32, i32) {
    %c0_i32 = arith.constant 0 : i32
    %c0_i32_0 = arith.constant 0 : i32
    %c0_i32_1 = arith.constant 0 : i32
    return %arg1, %c0_i32, %c0_i32_0 : i32, i32, i32
  }
  func.func @transform_10(%arg0: i32, %arg1: i32) -> (i32, i32, i32) {
    %c0_i32 = arith.constant 0 : i32
    %c0_i32_0 = arith.constant 0 : i32
    %c0_i32_1 = arith.constant 0 : i32
    return %arg0, %c0_i32, %c0_i32_0 : i32, i32, i32
  }
}

</mosaic_0001>

<llo_original>
// kernel: contextual_aggregator.1
$region0: #{contextual_aggregator.1}
  #allocation0 [shape = 'u32[]', space=smem, size = 0x4, offset = 0x4, fixed_abs, tag = 'smem constant byte address 0x4 - core index']
  #allocation1 [shape = 'u32[144,128]{1,0:T(1,128)}', space=vmem, size = 0x12000, scoped, tag = 'internal scratch']
  #allocation2 [shape = 'bf16[1,8,32]{2,1,0:T(8,128)(2,1)}', space=vmem, size = 0x800, scoped, tag = 'scratch operand']
  #allocation3 [shape = 'bf16[8,16]{1,0:T(8,128)(2,1)}', space=vmem, size = 0x800, scoped, tag = 'scratch operand']
  %s0 = inlined_call_operand.vmem [shape: s32[2,8,1], index: 0, kind: input, shape index: {}]
  %s1 = inlined_call_operand.vmem [shape: bf16[2,16,32], index: 1, kind: input, shape index: {}]
  %s2 = inlined_call_operand.vmem [shape: bf16[2,32,96], index: 2, kind: input, shape index: {}]
  %s3 = inlined_call_operand.vmem [shape: f32[2,1,96], index: 3, kind: input, shape index: {}]
  %s4 = inlined_call_operand.vmem [shape: bf16[2,32,32], index: 4, kind: input, shape index: {}]
  %s5 = inlined_call_operand.vmem [shape: f32[2,1,32], index: 5, kind: input, shape index: {}]
  %s6 = inlined_call_operand.vmem [shape: bf16[2,32,64], index: 6, kind: input, shape index: {}]
  %s7 = inlined_call_operand.vmem [shape: f32[2,1,64], index: 7, kind: input, shape index: {}]
  %s8 = inlined_call_operand.vmem [shape: bf16[2,64,32], index: 8, kind: input, shape index: {}]
  %s9 = inlined_call_operand.vmem [shape: f32[2,1,32], index: 9, kind: input, shape index: {}]
  %s10 = inlined_call_operand.hbm [shape: f32[2,1,32], index: 10, kind: output, shape index: {}]
  %s11 = sld [smem:[#allocation0]]
  $region85: #{contextual_aggregator.1} parent=0
    _
  %s13 = ssub.s32 1, %s11
  %s14 = scalar_select 0, %s13, %s11
  $region1: #{contextual_aggregator.1} parent=0
    #allocation4 [shape = 'u8[1024]{0}', space=vmem, size = 0x400, scoped, tag = 'output window, operand 0']
    #allocation5 [shape = 's32[2]{0}', space=sflag, size = 0x8, scoped, tag = 'scoped memory for contextual_aggregator.1']
    %15 = vsyncpa [#allocation5], 0
    %s16 = scalar_lea.sflag [#allocation5], 1
    %17 = vsyncpa %s16, 0
    loop: start=0, step=1, limit=6
    $region2: #{contextual_aggregator.1} parent=1 // loop_pre_header
      _
    $region3: #{contextual_aggregator.1} parent=1 // loop_header
      %s19 = sphi 0, %s23
      %p20 = scmp.ge.s32.totalorder %s19, 6
      %s26 = sphi 0, %s38
      %s27 = sphi 0, %s34
      %s28 = sphi 0, %s26
      %s29 = sphi 0, %s27
      %s30 = sphi 0, %s28
      %s31 = sphi 0, %s29
      %s41 = sphi 0, %s43
      %s44 = sphi 0, %s41
      %s45 = sphi 0, %s44
      %s61 = sphi 0, %s45
      %s67 = sphi 0, %s69
      %s70 = sphi 0, %s67
      %s71 = sphi 0, %s70
      %s87 = sphi 0, %s71
      %s93 = sphi 0, %s95
      %s96 = sphi 0, %s93
      %s97 = sphi 0, %s96
      %s113 = sphi 0, %s97
      %s119 = sphi 0, %s121
      %s122 = sphi 0, %s119
      %s123 = sphi 0, %s122
      %s139 = sphi 0, %s123
      %s145 = sphi 0, %s147
      %s148 = sphi 0, %s145
      %s149 = sphi 0, %s148
      %s165 = sphi 0, %s149
      %s171 = sphi 0, %s173
      %s174 = sphi 0, %s171
      %s175 = sphi 0, %s174
      %s191 = sphi 0, %s175
      %s197 = sphi 0, %s199
      %s200 = sphi 0, %s197
      %s201 = sphi 0, %s200
      %s217 = sphi 0, %s201
      %s223 = sphi 0, %s225
      %s226 = sphi 0, %s223
      %s227 = sphi 0, %s226
      %s243 = sphi 0, %s227
      %s249 = sphi 0, %s251
      %s252 = sphi 0, %s249
      %s253 = sphi 0, %s252
      %s269 = sphi 0, %s253
      %s275 = sphi 0, %s277
      %s278 = sphi 0, %s275
      %s279 = sphi 0, %s278
      %s295 = sphi 0, %s279
      %s301 = sphi 0, %s303
      %s304 = sphi 0, %s301
      %s305 = sphi 0, %s304
      %s321 = sphi 0, %s305
    $region4: #{contextual_aggregator.1} parent=1 // loop_header_branch
      %22 = sbr.rel (%p20) target = $region8
    $region5: #{contextual_aggregator.1} parent=1 // loop_body
      %s24 = ssub.s32 %s19, 1
      %s25 = ssub.s32 %s19, 2
      %s32 = sadd.s32 1, %s27
      %p33 = scmp.ge.s32.totalorder %s32, 2
      %s34 = scalar_select %p33, 0, %s32
      %s35 = sadd.s32 1, %s26
      %s36 = scalar_select %p33, %s35, %s26
      %p37 = scmp.ge.s32.totalorder %s36, 2
      %s38 = scalar_select %p37, 0, %s36
      %s39 = ssub.s32 %s26, %s38
      %p40 = scmp.eq.s32.totalorder %s39, 0
      %s42 = sadd.s32 %s41, 1
      %s43 = scalar_select %p40, %s41, %s42
      %p46 = pneg %p40
      %p47 = scmp.eq.s32.totalorder %s19, 3
      %p48 = por %p46, %p47
      %p49 = scmp.ne.s32.totalorder %s41, %s44
      %p50 = scmp.eq.s32.totalorder %s19, 0
      %p51 = por %p49, %p50
      %p52 = scmp.ne.s32.totalorder %s41, %s44
      %p53 = scmp.eq.s32.totalorder %s24, 3
      %p54 = por %p52, %p53
      %p55 = scmp.ne.s32.totalorder %s44, %s45
      %p56 = scmp.eq.s32.totalorder %s24, 0
      %p57 = por %p55, %p56
      %p58 = scmp.ne.s32.totalorder %s44, %s45
      %p59 = scmp.eq.s32.totalorder %s25, 3
      %p60 = por %p58, %p59
      %p62 = scmp.ne.s32.totalorder %s45, %s61
      %p63 = scmp.eq.s32.totalorder %s25, 0
      %p64 = por %p62, %p63
      %s65 = ssub.s32 %s27, %s34
      %p66 = scmp.eq.s32.totalorder %s65, 0
      %s68 = sadd.s32 %s67, 1
      %s69 = scalar_select %p66, %s67, %s68
      %p72 = pneg %p66
      %p73 = scmp.eq.s32.totalorder %s19, 3
      %p74 = por %p72, %p73
      %p75 = scmp.ne.s32.totalorder %s67, %s70
      %p76 = scmp.eq.s32.totalorder %s19, 0
      %p77 = por %p75, %p76
      %p78 = scmp.ne.s32.totalorder %s67, %s70
      %p79 = scmp.eq.s32.totalorder %s24, 3
      %p80 = por %p78, %p79
      %p81 = scmp.ne.s32.totalorder %s70, %s71
      %p82 = scmp.eq.s32.totalorder %s24, 0
      %p83 = por %p81, %p82
      %p84 = scmp.ne.s32.totalorder %s70, %s71
      %p85 = scmp.eq.s32.totalorder %s25, 3
      %p86 = por %p84, %p85
      %p88 = scmp.ne.s32.totalorder %s71, %s87
      %p89 = scmp.eq.s32.totalorder %s25, 0
      %p90 = por %p88, %p89
      %s91 = ssub.s32 %s27, %s34
      %p92 = scmp.eq.s32.totalorder %s91, 0
      %s94 = sadd.s32 %s93, 1
      %s95 = scalar_select %p92, %s93, %s94
      %p98 = pneg %p92
      %p99 = scmp.eq.s32.totalorder %s19, 3
      %p100 = por %p98, %p99
      %p101 = scmp.ne.s32.totalorder %s93, %s96
      %p102 = scmp.eq.s32.totalorder %s19, 0
      %p103 = por %p101, %p102
      %p104 = scmp.ne.s32.totalorder %s93, %s96
      %p105 = scmp.eq.s32.totalorder %s24, 3
      %p106 = por %p104, %p105
      %p107 = scmp.ne.s32.totalorder %s96, %s97
      %p108 = scmp.eq.s32.totalorder %s24, 0
      %p109 = por %p107, %p108
      %p110 = scmp.ne.s32.totalorder %s96, %s97
      %p111 = scmp.eq.s32.totalorder %s25, 3
      %p112 = por %p110, %p111
      %p114 = scmp.ne.s32.totalorder %s97, %s113
      %p115 = scmp.eq.s32.totalorder %s25, 0
      %p116 = por %p114, %p115
      %s117 = ssub.s32 %s27, %s34
      %p118 = scmp.eq.s32.totalorder %s117, 0
      %s120 = sadd.s32 %s119, 1
      %s121 = scalar_select %p118, %s119, %s120
      %p124 = pneg %p118
      %p125 = scmp.eq.s32.totalorder %s19, 3
      %p126 = por %p124, %p125
      %p127 = scmp.ne.s32.totalorder %s119, %s122
      %p128 = scmp.eq.s32.totalorder %s19, 0
      %p129 = por %p127, %p128
      %p130 = scmp.ne.s32.totalorder %s119, %s122
      %p131 = scmp.eq.s32.totalorder %s24, 3
      %p132 = por %p130, %p131
      %p133 = scmp.ne.s32.totalorder %s122, %s123
      %p134 = scmp.eq.s32.totalorder %s24, 0
      %p135 = por %p133, %p134
      %p136 = scmp.ne.s32.totalorder %s122, %s123
      %p137 = scmp.eq.s32.totalorder %s25, 3
      %p138 = por %p136, %p137
      %p140 = scmp.ne.s32.totalorder %s123, %s139
      %p141 = scmp.eq.s32.totalorder %s25, 0
      %p142 = por %p140, %p141
      %s143 = ssub.s32 %s27, %s34
      %p144 = scmp.eq.s32.totalorder %s143, 0
      %s146 = sadd.s32 %s145, 1
      %s147 = scalar_select %p144, %s145, %s146
      %p150 = pneg %p144
      %p151 = scmp.eq.s32.totalorder %s19, 3
      %p152 = por %p150, %p151
      %p153 = scmp.ne.s32.totalorder %s145, %s148
      %p154 = scmp.eq.s32.totalorder %s19, 0
      %p155 = por %p153, %p154
      %p156 = scmp.ne.s32.totalorder %s145, %s148
      %p157 = scmp.eq.s32.totalorder %s24, 3
      %p158 = por %p156, %p157
      %p159 = scmp.ne.s32.totalorder %s148, %s149
      %p160 = scmp.eq.s32.totalorder %s24, 0
      %p161 = por %p159, %p160
      %p162 = scmp.ne.s32.totalorder %s148, %s149
      %p163 = scmp.eq.s32.totalorder %s25, 3
      %p164 = por %p162, %p163
      %p166 = scmp.ne.s32.totalorder %s149, %s165
      %p167 = scmp.eq.s32.totalorder %s25, 0
      %p168 = por %p166, %p167
      %s169 = ssub.s32 %s27, %s34
      %p170 = scmp.eq.s32.totalorder %s169, 0
      %s172 = sadd.s32 %s171, 1
      %s173 = scalar_select %p170, %s171, %s172
      %p176 = pneg %p170
      %p177 = scmp.eq.s32.totalorder %s19, 3
      %p178 = por %p176, %p177
      %p179 = scmp.ne.s32.totalorder %s171, %s174
      %p180 = scmp.eq.s32.totalorder %s19, 0
      %p181 = por %p179, %p180
      %p182 = scmp.ne.s32.totalorder %s171, %s174
      %p183 = scmp.eq.s32.totalorder %s24, 3
      %p184 = por %p182, %p183
      %p185 = scmp.ne.s32.totalorder %s174, %s175
      %p186 = scmp.eq.s32.totalorder %s24, 0
      %p187 = por %p185, %p186
      %p188 = scmp.ne.s32.totalorder %s174, %s175
      %p189 = scmp.eq.s32.totalorder %s25, 3
      %p190 = por %p188, %p189
      %p192 = scmp.ne.s32.totalorder %s175, %s191
      %p193 = scmp.eq.s32.totalorder %s25, 0
      %p194 = por %p192, %p193
      %s195 = ssub.s32 %s27, %s34
      %p196 = scmp.eq.s32.totalorder %s195, 0
      %s198 = sadd.s32 %s197, 1
      %s199 = scalar_select %p196, %s197, %s198
      %p202 = pneg %p196
      %p203 = scmp.eq.s32.totalorder %s19, 3
      %p204 = por %p202, %p203
      %p205 = scmp.ne.s32.totalorder %s197, %s200
      %p206 = scmp.eq.s32.totalorder %s19, 0
      %p207 = por %p205, %p206
      %p208 = scmp.ne.s32.totalorder %s197, %s200
      %p209 = scmp.eq.s32.totalorder %s24, 3
      %p210 = por %p208, %p209
      %p211 = scmp.ne.s32.totalorder %s200, %s201
      %p212 = scmp.eq.s32.totalorder %s24, 0
      %p213 = por %p211, %p212
      %p214 = scmp.ne.s32.totalorder %s200, %s201
      %p215 = scmp.eq.s32.totalorder %s25, 3
      %p216 = por %p214, %p215
      %p218 = scmp.ne.s32.totalorder %s201, %s217
      %p219 = scmp.eq.s32.totalorder %s25, 0
      %p220 = por %p218, %p219
      %s221 = ssub.s32 %s27, %s34
      %p222 = scmp.eq.s32.totalorder %s221, 0
      %s224 = sadd.s32 %s223, 1
      %s225 = scalar_select %p222, %s223, %s224
      %p228 = pneg %p222
      %p229 = scmp.eq.s32.totalorder %s19, 3
      %p230 = por %p228, %p229
      %p231 = scmp.ne.s32.totalorder %s223, %s226
      %p232 = scmp.eq.s32.totalorder %s19, 0
      %p233 = por %p231, %p232
      %p234 = scmp.ne.s32.totalorder %s223, %s226
      %p235 = scmp.eq.s32.totalorder %s24, 3
      %p236 = por %p234, %p235
      %p237 = scmp.ne.s32.totalorder %s226, %s227
      %p238 = scmp.eq.s32.totalorder %s24, 0
      %p239 = por %p237, %p238
      %p240 = scmp.ne.s32.totalorder %s226, %s227
      %p241 = scmp.eq.s32.totalorder %s25, 3
      %p242 = por %p240, %p241
      %p244 = scmp.ne.s32.totalorder %s227, %s243
      %p245 = scmp.eq.s32.totalorder %s25, 0
      %p246 = por %p244, %p245
      %s247 = ssub.s32 %s27, %s34
      %p248 = scmp.eq.s32.totalorder %s247, 0
      %s250 = sadd.s32 %s249, 1
      %s251 = scalar_select %p248, %s249, %s250
      %p254 = pneg %p248
      %p255 = scmp.eq.s32.totalorder %s19, 3
      %p256 = por %p254, %p255
      %p257 = scmp.ne.s32.totalorder %s249, %s252
      %p258 = scmp.eq.s32.totalorder %s19, 0
      %p259 = por %p257, %p258
      %p260 = scmp.ne.s32.totalorder %s249, %s252
      %p261 = scmp.eq.s32.totalorder %s24, 3
      %p262 = por %p260, %p261
      %p263 = scmp.ne.s32.totalorder %s252, %s253
      %p264 = scmp.eq.s32.totalorder %s24, 0
      %p265 = por %p263, %p264
      %p266 = scmp.ne.s32.totalorder %s252, %s253
      %p267 = scmp.eq.s32.totalorder %s25, 3
      %p268 = por %p266, %p267
      %p270 = scmp.ne.s32.totalorder %s253, %s269
      %p271 = scmp.eq.s32.totalorder %s25, 0
      %p272 = por %p270, %p271
      %s273 = ssub.s32 %s27, %s34
      %p274 = scmp.eq.s32.totalorder %s273, 0
      %s276 = sadd.s32 %s275, 1
      %s277 = scalar_select %p274, %s275, %s276
      %p280 = pneg %p274
      %p281 = scmp.eq.s32.totalorder %s19, 3
      %p282 = por %p280, %p281
      %p283 = scmp.ne.s32.totalorder %s275, %s278
      %p284 = scmp.eq.s32.totalorder %s19, 0
      %p285 = por %p283, %p284
      %p286 = scmp.ne.s32.totalorder %s275, %s278
      %p287 = scmp.eq.s32.totalorder %s24, 3
      %p288 = por %p286, %p287
      %p289 = scmp.ne.s32.totalorder %s278, %s279
      %p290 = scmp.eq.s32.totalorder %s24, 0
      %p291 = por %p289, %p290
      %p292 = scmp.ne.s32.totalorder %s278, %s279
      %p293 = scmp.eq.s32.totalorder %s25, 3
      %p294 = por %p292, %p293
      %p296 = scmp.ne.s32.totalorder %s279, %s295
      %p297 = scmp.eq.s32.totalorder %s25, 0
      %p298 = por %p296, %p297
      %s299 = ssub.s32 %s26, %s38
      %p300 = scmp.eq.s32.totalorder %s299, 0
      %s302 = sadd.s32 %s301, 1
      %s303 = scalar_select %p300, %s301, %s302
      %p306 = pneg %p300
      %p307 = scmp.eq.s32.totalorder %s19, 3
      %p308 = por %p306, %p307
      %p309 = scmp.ne.s32.totalorder %s301, %s304
      %p310 = scmp.eq.s32.totalorder %s19, 0
      %p311 = por %p309, %p310
      %p312 = scmp.ne.s32.totalorder %s301, %s304
      %p313 = scmp.eq.s32.totalorder %s24, 3
      %p314 = por %p312, %p313
      %p315 = scmp.ne.s32.totalorder %s304, %s305
      %p316 = scmp.eq.s32.totalorder %s24, 0
      %p317 = por %p315, %p316
      %p318 = scmp.ne.s32.totalorder %s304, %s305
      %p319 = scmp.eq.s32.totalorder %s25, 3
      %p320 = por %p318, %p319
      %p322 = scmp.ne.s32.totalorder %s305, %s321
      %p323 = scmp.eq.s32.totalorder %s25, 0
      %p324 = por %p322, %p323
      %p325 = scmp.le.s32.totalorder 1, %s19
      %p326 = scmp.lt.s32.totalorder %s19, 5
      %p327 = pnand %p325, %p326
      %p328 = pneg %p327
      // Predicated region
      $region9: #{contextual_aggregator.1} parent=5 // pred_check
        _
      $region10: #{contextual_aggregator.1} parent=5 // pred_check_branch
        %330 = sbr.rel (%p327) target = $region12
      $region11: #{contextual_aggregator.1} parent=5 // pred_region
        %s331 = ssub.s32 %s19, 1
      $region12: #{contextual_aggregator.1} parent=5 // pred_fallthru
        _
      %p332 = scmp.lt.s32.totalorder %s19, 4
      // Predicated region
      $region13: #{contextual_aggregator.1} parent=5 // pred_check
        %p333 = pneg %p332
      $region14: #{contextual_aggregator.1} parent=5 // pred_check_branch
        %335 = sbr.rel (%p333) target = $region16
      $region15: #{contextual_aggregator.1} parent=5 // pred_region
        // Predicated region
        $region17: #{contextual_aggregator.1} parent=15 // pred_check
          %p336 = pneg %p51
        $region18: #{contextual_aggregator.1} parent=15 // pred_check_branch
          %338 = sbr.rel (%p336) target = $region20
        $region19: #{contextual_aggregator.1} parent=15 // pred_region
          %p339 = scmp.lt.s32.totalorder %s26, 1
          %s340 = scalar_select %p339, %s26, 1
          %s341 = smul.addr %s340, 8
          %s342 = scalar_lea.vmem %s0, %s341
        $region20: #{contextual_aggregator.1} parent=15 // pred_fallthru
          _
        // Predicated region
        $region21: #{contextual_aggregator.1} parent=15 // pred_check
          %p343 = pneg %p77
        $region22: #{contextual_aggregator.1} parent=15 // pred_check_branch
          %345 = sbr.rel (%p343) target = $region24
        $region23: #{contextual_aggregator.1} parent=15 // pred_region
          %p346 = scmp.lt.s32.totalorder %s27, 1
          %s347 = scalar_select %p346, %s27, 1
          %s348 = smul.addr %s347, 2
          %s349 = smul.addr %s348, 4
          %s350 = scalar_lea.vmem %s1, %s349
        $region24: #{contextual_aggregator.1} parent=15 // pred_fallthru
          _
        // Predicated region
        $region25: #{contextual_aggregator.1} parent=15 // pred_check
          %p351 = pneg %p103
        $region26: #{contextual_aggregator.1} parent=15 // pred_check_branch
          %353 = sbr.rel (%p351) target = $region28
        $region27: #{contextual_aggregator.1} parent=15 // pred_region
          %p354 = scmp.lt.s32.totalorder %s27, 1
          %s355 = scalar_select %p354, %s27, 1
          %s356 = smul.addr %s355, 4
          %s357 = smul.addr %s356, 4
          %s358 = scalar_lea.vmem %s2, %s357
        $region28: #{contextual_aggregator.1} parent=15 // pred_fallthru
          _
        // Predicated region
        $region29: #{contextual_aggregator.1} parent=15 // pred_check
          %p359 = pneg %p129
        $region30: #{contextual_aggregator.1} parent=15 // pred_check_branch
          %361 = sbr.rel (%p359) target = $region32
        $region31: #{contextual_aggregator.1} parent=15 // pred_region
          %p362 = scmp.lt.s32.totalorder %s27, 1
          %s363 = scalar_select %p362, %s27, 1
          %s364 = scalar_lea.vmem %s3, %s363
        $region32: #{contextual_aggregator.1} parent=15 // pred_fallthru
          _
        // Predicated region
        $region33: #{contextual_aggregator.1} parent=15 // pred_check
          %p365 = pneg %p155
        $region34: #{contextual_aggregator.1} parent=15 // pred_check_branch
          %367 = sbr.rel (%p365) target = $region36
        $region35: #{contextual_aggregator.1} parent=15 // pred_region
          %p368 = scmp.lt.s32.totalorder %s27, 1
          %s369 = scalar_select %p368, %s27, 1
          %s370 = smul.addr %s369, 4
          %s371 = smul.addr %s370, 4
          %s372 = scalar_lea.vmem %s4, %s371
        $region36: #{contextual_aggregator.1} parent=15 // pred_fallthru
          _
        // Predicated region
        $region37: #{contextual_aggregator.1} parent=15 // pred_check
          %p373 = pneg %p181
        $region38: #{contextual_aggregator.1} parent=15 // pred_check_branch
          %375 = sbr.rel (%p373) target = $region40
        $region39: #{contextual_aggregator.1} parent=15 // pred_region
          %p376 = scmp.lt.s32.totalorder %s27, 1
          %s377 = scalar_select %p376, %s27, 1
          %s378 = scalar_lea.vmem %s5, %s377
        $region40: #{contextual_aggregator.1} parent=15 // pred_fallthru
          _
        // Predicated region
        $region41: #{contextual_aggregator.1} parent=15 // pred_check
          %p379 = pneg %p207
        $region42: #{contextual_aggregator.1} parent=15 // pred_check_branch
          %381 = sbr.rel (%p379) target = $region44
        $region43: #{contextual_aggregator.1} parent=15 // pred_region
          %p382 = scmp.lt.s32.totalorder %s27, 1
          %s383 = scalar_select %p382, %s27, 1
          %s384 = smul.addr %s383, 4
          %s385 = smul.addr %s384, 4
          %s386 = scalar_lea.vmem %s6, %s385
        $region44: #{contextual_aggregator.1} parent=15 // pred_fallthru
          _
        // Predicated region
        $region45: #{contextual_aggregator.1} parent=15 // pred_check
          %p387 = pneg %p233
        $region46: #{contextual_aggregator.1} parent=15 // pred_check_branch
          %389 = sbr.rel (%p387) target = $region48
        $region47: #{contextual_aggregator.1} parent=15 // pred_region
          %p390 = scmp.lt.s32.totalorder %s27, 1
          %s391 = scalar_select %p390, %s27, 1
          %s392 = scalar_lea.vmem %s7, %s391
        $region48: #{contextual_aggregator.1} parent=15 // pred_fallthru
          _
        // Predicated region
        $region49: #{contextual_aggregator.1} parent=15 // pred_check
          %p393 = pneg %p259
        $region50: #{contextual_aggregator.1} parent=15 // pred_check_branch
          %395 = sbr.rel (%p393) target = $region52
        $region51: #{contextual_aggregator.1} parent=15 // pred_region
          %p396 = scmp.lt.s32.totalorder %s27, 1
          %s397 = scalar_select %p396, %s27, 1
          %s398 = smul.addr %s397, 8
          %s399 = smul.addr %s398, 4
          %s400 = scalar_lea.vmem %s8, %s399
        $region52: #{contextual_aggregator.1} parent=15 // pred_fallthru
          _
        // Predicated region
        $region53: #{contextual_aggregator.1} parent=15 // pred_check
          %p401 = pneg %p285
        $region54: #{contextual_aggregator.1} parent=15 // pred_check_branch
          %403 = sbr.rel (%p401) target = $region56
        $region55: #{contextual_aggregator.1} parent=15 // pred_region
          %p404 = scmp.lt.s32.totalorder %s27, 1
          %s405 = scalar_select %p404, %s27, 1
          %s406 = scalar_lea.vmem %s9, %s405
        $region56: #{contextual_aggregator.1} parent=15 // pred_fallthru
          _
      $region16: #{contextual_aggregator.1} parent=5 // pred_fallthru
        _
      %p407 = scmp.le.s32.totalorder 1, %s19
      %p408 = scmp.lt.s32.totalorder %s19, 5
      %p409 = pnand %p407, %p408
      %p410 = pneg %p409
      // Predicated region
      $region57: #{contextual_aggregator.1} parent=5 // pred_check
        _
      $region58: #{contextual_aggregator.1} parent=5 // pred_check_branch
        %412 = sbr.rel (%p409) target = $region60
      $region59: #{contextual_aggregator.1} parent=5 // pred_region
        %s413 = ssub.s32 %s19, 1
        %p414 = scmp.lt.s32.totalorder %s28, 1
        %s415 = scalar_select %p414, %s28, 1
        %s416 = smul.addr %s415, 8
        %s417 = scalar_lea.vmem %s0, %s416
        %p418 = pneg %p57
        %p419 = pneg %p54
        %p420 = scmp.lt.s32.totalorder %s29, 1
        %s421 = scalar_select %p420, %s29, 1
        %s422 = smul.addr %s421, 2
        %s423 = smul.addr %s422, 4
        %s424 = scalar_lea.vmem %s1, %s423
        %p425 = pneg %p83
        %p426 = pneg %p80
        %p427 = scmp.lt.s32.totalorder %s29, 1
        %s428 = scalar_select %p427, %s29, 1
        %s429 = smul.addr %s428, 4
        %s430 = smul.addr %s429, 4
        %s431 = scalar_lea.vmem %s2, %s430
        %p432 = pneg %p109
        %p433 = pneg %p106
        %p434 = scmp.lt.s32.totalorder %s29, 1
        %s435 = scalar_select %p434, %s29, 1
        %s436 = scalar_lea.vmem %s3, %s435
        %p437 = pneg %p135
        %p438 = pneg %p132
        %p439 = scmp.lt.s32.totalorder %s29, 1
        %s440 = scalar_select %p439, %s29, 1
        %s441 = smul.addr %s440, 4
        %s442 = smul.addr %s441, 4
        %s443 = scalar_lea.vmem %s4, %s442
        %p444 = pneg %p161
        %p445 = pneg %p158
        %p446 = scmp.lt.s32.totalorder %s29, 1
        %s447 = scalar_select %p446, %s29, 1
        %s448 = scalar_lea.vmem %s5, %s447
        %p449 = pneg %p187
        %p450 = pneg %p184
        %p451 = scmp.lt.s32.totalorder %s29, 1
        %s452 = scalar_select %p451, %s29, 1
        %s453 = smul.addr %s452, 4
        %s454 = smul.addr %s453, 4
        %s455 = scalar_lea.vmem %s6, %s454
        %p456 = pneg %p213
        %p457 = pneg %p210
        %p458 = scmp.lt.s32.totalorder %s29, 1
        %s459 = scalar_select %p458, %s29, 1
        %s460 = scalar_lea.vmem %s7, %s459
        %p461 = pneg %p239
        %p462 = pneg %p236
        %p463 = scmp.lt.s32.totalorder %s29, 1
        %s464 = scalar_select %p463, %s29, 1
        %s465 = smul.addr %s464, 8
        %s466 = smul.addr %s465, 4
        %s467 = scalar_lea.vmem %s8, %s466
        %p468 = pneg %p265
        %p469 = pneg %p262
        %p470 = scmp.lt.s32.totalorder %s29, 1
        %s471 = scalar_select %p470, %s29, 1
        %s472 = scalar_lea.vmem %s9, %s471
        %p473 = pneg %p291
        %p474 = pneg %p288
        %p475 = pneg %p317
        %p476 = pneg %p314
        %s477 = sand.u32 %s304, 1
        %s478 = scalar_lea.sflag [#allocation5], %s477
        %s479 = sand.u32 %s304, 1
        %s480 = scalar_lea.vmem [#allocation4], %s479
        %p481 = scmp.lt.s32.totalorder %s28, 1
        %s482 = scalar_select %p481, %s28, 1
        %s483 = smul.addr %s482, 8
        %s484 = scalar_lea.vmem %s0, %s483
        %p485 = scmp.lt.s32.totalorder %s29, 1
        %s486 = scalar_select %p485, %s29, 1
        %s487 = smul.addr %s486, 2
        %s488 = smul.addr %s487, 4
        %s489 = scalar_lea.vmem %s1, %s488
        %p490 = scmp.lt.s32.totalorder %s29, 1
        %s491 = scalar_select %p490, %s29, 1
        %s492 = smul.addr %s491, 4
        %s493 = smul.addr %s492, 4
        %s494 = scalar_lea.vmem %s2, %s493
        %p495 = scmp.lt.s32.totalorder %s29, 1
        %s496 = scalar_select %p495, %s29, 1
        %s497 = scalar_lea.vmem %s3, %s496
        %p498 = scmp.lt.s32.totalorder %s29, 1
        %s499 = scalar_select %p498, %s29, 1
        %s500 = smul.addr %s499, 4
        %s501 = smul.addr %s500, 4
        %s502 = scalar_lea.vmem %s4, %s501
        %p503 = scmp.lt.s32.totalorder %s29, 1
        %s504 = scalar_select %p503, %s29, 1
        %s505 = scalar_lea.vmem %s5, %s504
        %p506 = scmp.lt.s32.totalorder %s29, 1
        %s507 = scalar_select %p506, %s29, 1
        %s508 = smul.addr %s507, 4
        %s509 = smul.addr %s508, 4
        %s510 = scalar_lea.vmem %s6, %s509
        %p511 = scmp.lt.s32.totalorder %s29, 1
        %s512 = scalar_select %p511, %s29, 1
        %s513 = scalar_lea.vmem %s7, %s512
        %p514 = scmp.lt.s32.totalorder %s29, 1
        %s515 = scalar_select %p514, %s29, 1
        %s516 = smul.addr %s515, 8
        %s517 = smul.addr %s516, 4
        %s518 = scalar_lea.vmem %s8, %s517
        %p519 = scmp.lt.s32.totalorder %s29, 1
        %s520 = scalar_select %p519, %s29, 1
        %s521 = scalar_lea.vmem %s9, %s520
        %p523 = scmp.eq.s32.totalorder %s29, 0
        // Predicated region
        $region61: #{contextual_aggregator.1} parent=59 // pred_check
          %p524 = pneg %p523
        $region62: #{contextual_aggregator.1} parent=59 // pred_check_branch
          %526 = sbr.rel (%p524) target = $region64
        $region63: #{contextual_aggregator.1} parent=59 // pred_region
          %v527 = vld [vmem:[%s484] sm:$0xff]
          %v528 = vcvt.s32.f32 %v527
          %v529 = vpack.c.bf16 %v528, %v528
          %531 = vset.pattern.permute.xlu0 0
          %532 = vperm.xlu0 %531, %v529
          %v533 = vpop.permute.xlu0 %532
          %vm535 = vcmask 257024
          %536 = vst.msk [vmem:[#allocation2] sm:$0xf] %vm535, %v533
          %v537 = vlaneseq
          %v538 = vand.u32 %v537, 127
          %539 = vset.pattern.permute.xlu0 0
          %540 = vperm.xlu0 %539, %v527
          %v541 = vpop.permute.xlu0 %540
          %vm542 = vcmp.eq.s32.totalorder %v541, %v538
          %v543 = vsel %vm542, 1, 0
          %v544 = vcvt.s32.f32 %v543
          %v545 = vpack.c.bf16 %v544, %v544
          %vm546 = vcmask 125952
          %547 = vst.msk [vmem:[#allocation3] sm:$0xf] %vm546, %v545
        $region64: #{contextual_aggregator.1} parent=59 // pred_fallthru
          _
        %v548 = vld [vmem:[#allocation3] sm:$0xf]
        %v549 = vld [vmem:[%s489] sm:$0xf]
        %v550 = vld [vmem:[%s489 + $0x4] sm:$0xf]
        %v553 = vunpack.c.l.b16 %v549
        %v554 = vunpack.c.l.b16 %v550
        %v555 = vpack.c.b16 %v554, %v553
        %vm557 = vcmask 130048
        %v559 = vsel %vm557, %v548, 0
        %561 = vmatprep.subr.bf16.mxu0 0
        %562 = vmatpush1.bf16.msra.mxu0 %v555
        %563 = vmatprep.subr.bf16.mxu0 0
        %564 = vmatpush1.bf16.msra.mxu0 0
        %565 = vmatprep.subr.bf16.mxu0 0
        %566 = vmatpush1.bf16.msra.mxu0 0
        %567 = vmatprep.subr.bf16.mxu0 0
        %568 = vmatpush1.bf16.msra.mxu0 0
        %569 = vmatprep.subr.bf16.mxu0 0
        %570 = vmatpush1.bf16.msra.mxu0 0
        %571 = vmatprep.subr.bf16.mxu0 0
        %572 = vmatpush1.bf16.msra.mxu0 0
        %573 = vmatprep.subr.bf16.mxu0 0
        %574 = vmatpush1.bf16.msra.mxu0 0
        %575 = vmatprep.subr.bf16.mxu0 0
        %576 = vmatpush1.bf16.msra.mxu0 0
        %577 = vmatprep.subr.bf16.mxu0 0
        %578 = vmatpush1.bf16.msra.mxu0 0
        %579 = vmatprep.subr.bf16.mxu0 0
        %580 = vmatpush1.bf16.msra.mxu0 0
        %581 = vmatprep.subr.bf16.mxu0 0
        %582 = vmatpush1.bf16.msra.mxu0 0
        %583 = vmatprep.subr.bf16.mxu0 0
        %584 = vmatpush1.bf16.msra.mxu0 0
        %585 = vmatprep.subr.bf16.mxu0 0
        %586 = vmatpush1.bf16.msra.mxu0 0
        %587 = vmatprep.subr.bf16.mxu0 0
        %588 = vmatpush1.bf16.msra.mxu0 0
        %589 = vmatprep.subr.bf16.mxu0 0
        %590 = vmatpush1.bf16.msra.mxu0 0
        %591 = vmatprep.subr.bf16.mxu0 0
        %592 = vmatpush1.bf16.msra.mxu0 0
        %593 = vmatprep.mubr.bf16.mxu0 0
        %594 = vmatmul.mubr.bf16.gmra.mrb[0].mxu0 %v559
        %v595 = vpop.f32.mrb[0].mxu0
        %v596 = vadd.f32 0.0, %v595
        %v597 = vpop.f32.mrb[0].mxu0
        %v598 = vpop.f32.mrb[0].mxu0
        %v599 = vpop.f32.mrb[0].mxu0
        %600 = vdwg.mxu0
        %v601 = vld [vmem:[#allocation2] sm:$0xf]
        %v602 = vunpack.c.l.bf16 %v601
        %v603 = vadd.f32 %v602, %v596
        %v604 = vpack.c.bf16 %v603, %v603
        %v605 = vld [vmem:[%s494] sm:$0xf]
        %v606 = vld [vmem:[%s494 + $0x4] sm:$0xf]
        %v607 = vld [vmem:[%s494 + $0x8] sm:$0xf]
        %v608 = vld [vmem:[%s494 + $0xc] sm:$0xf]
        %v609 = vld [vmem:[%s497] sm:$0x1]
        %v611 = vlaneseq
        %v612 = vshrl.u32 %v611, 7
        %v613 = vsub.s32 0, %v612
        %v614 = vrot.slane %v609, %v613
        %v620 = vunpack.c.l.b16 %v605
        %v621 = vunpack.c.l.b16 %v606
        %v622 = vunpack.c.l.b16 %v607
        %v623 = vunpack.c.l.b16 %v608
        %v624 = vpack.c.b16 %v621, %v620
        %v625 = vpack.c.b16 %v623, %v622
        %vm628 = vcmask 261120
        %v630 = vsel %vm628, %v604, 0
        %632 = vmatprep.subr.bf16.mxu0 0
        %633 = vmatpush1.bf16.msra.mxu0 %v624
        %634 = vmatprep.subr.bf16.mxu0 0
        %635 = vmatpush1.bf16.msra.mxu0 %v625
        %636 = vmatprep.subr.bf16.mxu0 0
        %637 = vmatpush1.bf16.msra.mxu0 0
        %638 = vmatprep.subr.bf16.mxu0 0
        %639 = vmatpush1.bf16.msra.mxu0 0
        %640 = vmatprep.subr.bf16.mxu0 0
        %641 = vmatpush1.bf16.msra.mxu0 0
        %642 = vmatprep.subr.bf16.mxu0 0
        %643 = vmatpush1.bf16.msra.mxu0 0
        %644 = vmatprep.subr.bf16.mxu0 0
        %645 = vmatpush1.bf16.msra.mxu0 0
        %646 = vmatprep.subr.bf16.mxu0 0
        %647 = vmatpush1.bf16.msra.mxu0 0
        %648 = vmatprep.subr.bf16.mxu0 0
        %649 = vmatpush1.bf16.msra.mxu0 0
        %650 = vmatprep.subr.bf16.mxu0 0
        %651 = vmatpush1.bf16.msra.mxu0 0
        %652 = vmatprep.subr.bf16.mxu0 0
        %653 = vmatpush1.bf16.msra.mxu0 0
        %654 = vmatprep.subr.bf16.mxu0 0
        %655 = vmatpush1.bf16.msra.mxu0 0
        %656 = vmatprep.subr.bf16.mxu0 0
        %657 = vmatpush1.bf16.msra.mxu0 0
        %658 = vmatprep.subr.bf16.mxu0 0
        %659 = vmatpush1.bf16.msra.mxu0 0
        %660 = vmatprep.subr.bf16.mxu0 0
        %661 = vmatpush1.bf16.msra.mxu0 0
        %662 = vmatprep.subr.bf16.mxu0 0
        %663 = vmatpush1.bf16.msra.mxu0 0
        %664 = vmatprep.mubr.bf16.mxu0 0
        %665 = vmatmul.mubr.bf16.gmra.mrb[0].mxu0 %v630
        %v666 = vpop.f32.mrb[0].mxu0
        %v667 = vadd.f32 %v614, %v666
        %v668 = vpop.f32.mrb[0].mxu0
        %v669 = vpop.f32.mrb[0].mxu0
        %v670 = vpop.f32.mrb[0].mxu0
        %671 = vdwg.mxu0
        %v672 = vpack.c.bf16 %v667, %v667
        %674 = vrot.lane.b32.xlu0 %v672, 96
        %v675 = vpop.permute.xlu0 %674
        %vm676 = vcmask 64512
        %v678 = vsel %vm676, %v672, 0
        %v681 = vsel %vm676, %v675, 0
        %683 = vmatprep.subr.bf16.mxu0 0
        %684 = vmatpush1.bf16.xpose.msra.mxu0 %v681
        %685 = vmatprep.subr.bf16.mxu0 0
        %686 = vmatpush1.bf16.xpose.msra.mxu0 0
        %687 = vmatprep.subr.bf16.mxu0 0
        %688 = vmatpush1.bf16.xpose.msra.mxu0 0
        %689 = vmatprep.subr.bf16.mxu0 0
        %690 = vmatpush1.bf16.xpose.msra.mxu0 0
        %691 = vmatprep.subr.bf16.mxu0 0
        %692 = vmatpush1.bf16.xpose.msra.mxu0 0
        %693 = vmatprep.subr.bf16.mxu0 0
        %694 = vmatpush1.bf16.xpose.msra.mxu0 0
        %695 = vmatprep.subr.bf16.mxu0 0
        %696 = vmatpush1.bf16.xpose.msra.mxu0 0
        %697 = vmatprep.subr.bf16.mxu0 0
        %698 = vmatpush1.bf16.xpose.msra.mxu0 0
        %699 = vmatprep.subr.bf16.mxu0 0
        %700 = vmatpush1.bf16.xpose.msra.mxu0 0
        %701 = vmatprep.subr.bf16.mxu0 0
        %702 = vmatpush1.bf16.xpose.msra.mxu0 0
        %703 = vmatprep.subr.bf16.mxu0 0
        %704 = vmatpush1.bf16.xpose.msra.mxu0 0
        %705 = vmatprep.subr.bf16.mxu0 0
        %706 = vmatpush1.bf16.xpose.msra.mxu0 0
        %707 = vmatprep.subr.bf16.mxu0 0
        %708 = vmatpush1.bf16.xpose.msra.mxu0 0
        %709 = vmatprep.subr.bf16.mxu0 0
        %710 = vmatpush1.bf16.xpose.msra.mxu0 0
        %711 = vmatprep.subr.bf16.mxu0 0
        %712 = vmatpush1.bf16.xpose.msra.mxu0 0
        %713 = vmatprep.subr.bf16.mxu0 0
        %714 = vmatpush1.bf16.xpose.msra.mxu0 0
        %715 = vmatprep.mubr.bf16.mxu0 0
        %716 = vmatmul.mubr.bf16.gmra.mrb[0].mxu0 %v678
        %v717 = vpop.f32.mrb[0].mxu0
        %v718 = vadd.f32 0.0, %v717
        %v719 = vpop.f32.mrb[0].mxu0
        %v720 = vpop.f32.mrb[0].mxu0
        %v721 = vpop.f32.mrb[0].mxu0
        %722 = vdwg.mxu0
        %v723 = vsel %vm676, %v718, -inf
        %724 = vmax.xlane.f32.xlu0 %v723
        %v725 = vpop.xlane.xlu0 %724
        %v726 = vsub.f32 %v718, %v725
        %v727 = vmul.f32 %v726, 1.442695
        %v728 = vpow.pop %v727
        %v729 = vsel %vm676, %v728, 0.0
        %730 = vadd.xlane.f32.xlu0 %v729
        %v731 = vpop.xlane.xlu0 %730
        %v732 = vrcp.pop %v731
        %v733 = vpack.c.bf16 %v728, %v728
        %734 = vrot.lane.b32.xlu0 %v672, 64
        %v735 = vpop.permute.xlu0 %734
        %v737 = vsel %vm676, %v733, 0
        %vm739 = vcmask 1043456
        %v741 = vsel %vm739, %v735, 0
        %743 = vmatprep.subr.bf16.mxu0 0
        %744 = vmatpush1.bf16.msra.mxu0 %v741
        %745 = vmatprep.subr.bf16.mxu0 0
        %746 = vmatpush1.bf16.msra.mxu0 0
        %747 = vmatprep.subr.bf16.mxu0 0
        %748 = vmatpush1.bf16.msra.mxu0 0
        %749 = vmatprep.subr.bf16.mxu0 0
        %750 = vmatpush1.bf16.msra.mxu0 0
        %751 = vmatprep.subr.bf16.mxu0 0
        %752 = vmatpush1.bf16.msra.mxu0 0
        %753 = vmatprep.subr.bf16.mxu0 0
        %754 = vmatpush1.bf16.msra.mxu0 0
        %755 = vmatprep.subr.bf16.mxu0 0
        %756 = vmatpush1.bf16.msra.mxu0 0
        %757 = vmatprep.subr.bf16.mxu0 0
        %758 = vmatpush1.bf16.msra.mxu0 0
        %759 = vmatprep.subr.bf16.mxu0 0
        %760 = vmatpush1.bf16.msra.mxu0 0
        %761 = vmatprep.subr.bf16.mxu0 0
        %762 = vmatpush1.bf16.msra.mxu0 0
        %763 = vmatprep.subr.bf16.mxu0 0
        %764 = vmatpush1.bf16.msra.mxu0 0
        %765 = vmatprep.subr.bf16.mxu0 0
        %766 = vmatpush1.bf16.msra.mxu0 0
        %767 = vmatprep.subr.bf16.mxu0 0
        %768 = vmatpush1.bf16.msra.mxu0 0
        %769 = vmatprep.subr.bf16.mxu0 0
        %770 = vmatpush1.bf16.msra.mxu0 0
        %771 = vmatprep.subr.bf16.mxu0 0
        %772 = vmatpush1.bf16.msra.mxu0 0
        %773 = vmatprep.subr.bf16.mxu0 0
        %774 = vmatpush1.bf16.msra.mxu0 0
        %775 = vmatprep.mubr.bf16.mxu0 0
        %776 = vmatmul.mubr.bf16.gmra.mrb[0].mxu0 %v737
        %v777 = vpop.f32.mrb[0].mxu0
        %v778 = vadd.f32 0.0, %v777
        %v779 = vpop.f32.mrb[0].mxu0
        %v780 = vpop.f32.mrb[0].mxu0
        %v781 = vpop.f32.mrb[0].mxu0
        %782 = vdwg.mxu0
        %v783 = vmul.f32 %v778, %v732
        %784 = vrot.lane.b32.xlu0 %v672, 120
        %v785 = vpop.permute.xlu0 %784
        %786 = vrot.lane.b32.xlu0 %v672, 88
        %v787 = vpop.permute.xlu0 %786
        %v789 = vsel %vm676, %v785, 0
        %v792 = vsel %vm676, %v787, 0
        %794 = vmatprep.subr.bf16.mxu0 0
        %795 = vmatpush1.bf16.xpose.msra.mxu0 %v792
        %796 = vmatprep.subr.bf16.mxu0 0
        %797 = vmatpush1.bf16.xpose.msra.mxu0 0
        %798 = vmatprep.subr.bf16.mxu0 0
        %799 = vmatpush1.bf16.xpose.msra.mxu0 0
        %800 = vmatprep.subr.bf16.mxu0 0
        %801 = vmatpush1.bf16.xpose.msra.mxu0 0
        %802 = vmatprep.subr.bf16.mxu0 0
        %803 = vmatpush1.bf16.xpose.msra.mxu0 0
        %804 = vmatprep.subr.bf16.mxu0 0
        %805 = vmatpush1.bf16.xpose.msra.mxu0 0
        %806 = vmatprep.subr.bf16.mxu0 0
        %807 = vmatpush1.bf16.xpose.msra.mxu0 0
        %808 = vmatprep.subr.bf16.mxu0 0
        %809 = vmatpush1.bf16.xpose.msra.mxu0 0
        %810 = vmatprep.subr.bf16.mxu0 0
        %811 = vmatpush1.bf16.xpose.msra.mxu0 0
        %812 = vmatprep.subr.bf16.mxu0 0
        %813 = vmatpush1.bf16.xpose.msra.mxu0 0
        %814 = vmatprep.subr.bf16.mxu0 0
        %815 = vmatpush1.bf16.xpose.msra.mxu0 0
        %816 = vmatprep.subr.bf16.mxu0 0
        %817 = vmatpush1.bf16.xpose.msra.mxu0 0
        %818 = vmatprep.subr.bf16.mxu0 0
        %819 = vmatpush1.bf16.xpose.msra.mxu0 0
        %820 = vmatprep.subr.bf16.mxu0 0
        %821 = vmatpush1.bf16.xpose.msra.mxu0 0
        %822 = vmatprep.subr.bf16.mxu0 0
        %823 = vmatpush1.bf16.xpose.msra.mxu0 0
        %824 = vmatprep.subr.bf16.mxu0 0
        %825 = vmatpush1.bf16.xpose.msra.mxu0 0
        %826 = vmatprep.mubr.bf16.mxu0 0
        %827 = vmatmul.mubr.bf16.gmra.mrb[0].mxu0 %v789
        %v828 = vpop.f32.mrb[0].mxu0
        %v829 = vadd.f32 0.0, %v828
        %v830 = vpop.f32.mrb[0].mxu0
        %v831 = vpop.f32.mrb[0].mxu0
        %v832 = vpop.f32.mrb[0].mxu0
        %833 = vdwg.mxu0
        %v834 = vsel %vm676, %v829, -inf
        %835 = vmax.xlane.f32.xlu0 %v834
        %v836 = vpop.xlane.xlu0 %835
        %v837 = vsub.f32 %v829, %v836
        %v838 = vmul.f32 %v837, 1.442695
        %v839 = vpow.pop %v838
        %v840 = vsel %vm676, %v839, 0.0
        %841 = vadd.xlane.f32.xlu0 %v840
        %v842 = vpop.xlane.xlu0 %841
        %v843 = vrcp.pop %v842
        %v844 = vpack.c.bf16 %v839, %v839
        %845 = vrot.lane.b32.xlu0 %v672, 56
        %v846 = vpop.permute.xlu0 %845
        %v848 = vsel %vm676, %v844, 0
        %v851 = vsel %vm739, %v846, 0
        %853 = vmatprep.subr.bf16.mxu0 0
        %854 = vmatpush1.bf16.msra.mxu0 %v851
        %855 = vmatprep.subr.bf16.mxu0 0
        %856 = vmatpush1.bf16.msra.mxu0 0
        %857 = vmatprep.subr.bf16.mxu0 0
        %858 = vmatpush1.bf16.msra.mxu0 0
        %859 = vmatprep.subr.bf16.mxu0 0
        %860 = vmatpush1.bf16.msra.mxu0 0
        %861 = vmatprep.subr.bf16.mxu0 0
        %862 = vmatpush1.bf16.msra.mxu0 0
        %863 = vmatprep.subr.bf16.mxu0 0
        %864 = vmatpush1.bf16.msra.mxu0 0
        %865 = vmatprep.subr.bf16.mxu0 0
        %866 = vmatpush1.bf16.msra.mxu0 0
        %867 = vmatprep.subr.bf16.mxu0 0
        %868 = vmatpush1.bf16.msra.mxu0 0
        %869 = vmatprep.subr.bf16.mxu0 0
        %870 = vmatpush1.bf16.msra.mxu0 0
        %871 = vmatprep.subr.bf16.mxu0 0
        %872 = vmatpush1.bf16.msra.mxu0 0
        %873 = vmatprep.subr.bf16.mxu0 0
        %874 = vmatpush1.bf16.msra.mxu0 0
        %875 = vmatprep.subr.bf16.mxu0 0
        %876 = vmatpush1.bf16.msra.mxu0 0
        %877 = vmatprep.subr.bf16.mxu0 0
        %878 = vmatpush1.bf16.msra.mxu0 0
        %879 = vmatprep.subr.bf16.mxu0 0
        %880 = vmatpush1.bf16.msra.mxu0 0
        %881 = vmatprep.subr.bf16.mxu0 0
        %882 = vmatpush1.bf16.msra.mxu0 0
        %883 = vmatprep.subr.bf16.mxu0 0
        %884 = vmatpush1.bf16.msra.mxu0 0
        %885 = vmatprep.mubr.bf16.mxu0 0
        %886 = vmatmul.mubr.bf16.gmra.mrb[0].mxu0 %v848
        %v887 = vpop.f32.mrb[0].mxu0
        %v888 = vadd.f32 0.0, %v887
        %v889 = vpop.f32.mrb[0].mxu0
        %v890 = vpop.f32.mrb[0].mxu0
        %v891 = vpop.f32.mrb[0].mxu0
        %892 = vdwg.mxu0
        %v893 = vmul.f32 %v888, %v843
        %894 = vrot.lane.b32.xlu0 %v672, 112
        %v895 = vpop.permute.xlu0 %894
        %896 = vrot.lane.b32.xlu0 %v672, 80
        %v897 = vpop.permute.xlu0 %896
        %v899 = vsel %vm676, %v895, 0
        %v902 = vsel %vm676, %v897, 0
        %904 = vmatprep.subr.bf16.mxu0 0
        %905 = vmatpush1.bf16.xpose.msra.mxu0 %v902
        %906 = vmatprep.subr.bf16.mxu0 0
        %907 = vmatpush1.bf16.xpose.msra.mxu0 0
        %908 = vmatprep.subr.bf16.mxu0 0
        %909 = vmatpush1.bf16.xpose.msra.mxu0 0
        %910 = vmatprep.subr.bf16.mxu0 0
        %911 = vmatpush1.bf16.xpose.msra.mxu0 0
        %912 = vmatprep.subr.bf16.mxu0 0
        %913 = vmatpush1.bf16.xpose.msra.mxu0 0
        %914 = vmatprep.subr.bf16.mxu0 0
        %915 = vmatpush1.bf16.xpose.msra.mxu0 0
        %916 = vmatprep.subr.bf16.mxu0 0
        %917 = vmatpush1.bf16.xpose.msra.mxu0 0
        %918 = vmatprep.subr.bf16.mxu0 0
        %919 = vmatpush1.bf16.xpose.msra.mxu0 0
        %920 = vmatprep.subr.bf16.mxu0 0
        %921 = vmatpush1.bf16.xpose.msra.mxu0 0
        %922 = vmatprep.subr.bf16.mxu0 0
        %923 = vmatpush1.bf16.xpose.msra.mxu0 0
        %924 = vmatprep.subr.bf16.mxu0 0
        %925 = vmatpush1.bf16.xpose.msra.mxu0 0
        %926 = vmatprep.subr.bf16.mxu0 0
        %927 = vmatpush1.bf16.xpose.msra.mxu0 0
        %928 = vmatprep.subr.bf16.mxu0 0
        %929 = vmatpush1.bf16.xpose.msra.mxu0 0
        %930 = vmatprep.subr.bf16.mxu0 0
        %931 = vmatpush1.bf16.xpose.msra.mxu0 0
        %932 = vmatprep.subr.bf16.mxu0 0
        %933 = vmatpush1.bf16.xpose.msra.mxu0 0
        %934 = vmatprep.subr.bf16.mxu0 0
        %935 = vmatpush1.bf16.xpose.msra.mxu0 0
        %936 = vmatprep.mubr.bf16.mxu0 0
        %937 = vmatmul.mubr.bf16.gmra.mrb[0].mxu0 %v899
        %v938 = vpop.f32.mrb[0].mxu0
        %v939 = vadd.f32 0.0, %v938
        %v940 = vpop.f32.mrb[0].mxu0
        %v941 = vpop.f32.mrb[0].mxu0
        %v942 = vpop.f32.mrb[0].mxu0
        %943 = vdwg.mxu0
        %v944 = vsel %vm676, %v939, -inf
        %945 = vmax.xlane.f32.xlu0 %v944
        %v946 = vpop.xlane.xlu0 %945
        %v947 = vsub.f32 %v939, %v946
        %v948 = vmul.f32 %v947, 1.442695
        %v949 = vpow.pop %v948
        %v950 = vsel %vm676, %v949, 0.0
        %951 = vadd.xlane.f32.xlu0 %v950
        %v952 = vpop.xlane.xlu0 %951
        %v953 = vrcp.pop %v952
        %v954 = vpack.c.bf16 %v949, %v949
        %955 = vrot.lane.b32.xlu0 %v672, 48
        %v956 = vpop.permute.xlu0 %955
        %v958 = vsel %vm676, %v954, 0
        %v961 = vsel %vm739, %v956, 0
        %963 = vmatprep.subr.bf16.mxu0 0
        %964 = vmatpush1.bf16.msra.mxu0 %v961
        %965 = vmatprep.subr.bf16.mxu0 0
        %966 = vmatpush1.bf16.msra.mxu0 0
        %967 = vmatprep.subr.bf16.mxu0 0
        %968 = vmatpush1.bf16.msra.mxu0 0
        %969 = vmatprep.subr.bf16.mxu0 0
        %970 = vmatpush1.bf16.msra.mxu0 0
        %971 = vmatprep.subr.bf16.mxu0 0
        %972 = vmatpush1.bf16.msra.mxu0 0
        %973 = vmatprep.subr.bf16.mxu0 0
        %974 = vmatpush1.bf16.msra.mxu0 0
        %975 = vmatprep.subr.bf16.mxu0 0
        %976 = vmatpush1.bf16.msra.mxu0 0
        %977 = vmatprep.subr.bf16.mxu0 0
        %978 = vmatpush1.bf16.msra.mxu0 0
        %979 = vmatprep.subr.bf16.mxu0 0
        %980 = vmatpush1.bf16.msra.mxu0 0
        %981 = vmatprep.subr.bf16.mxu0 0
        %982 = vmatpush1.bf16.msra.mxu0 0
        %983 = vmatprep.subr.bf16.mxu0 0
        %984 = vmatpush1.bf16.msra.mxu0 0
        %985 = vmatprep.subr.bf16.mxu0 0
        %986 = vmatpush1.bf16.msra.mxu0 0
        %987 = vmatprep.subr.bf16.mxu0 0
        %988 = vmatpush1.bf16.msra.mxu0 0
        %989 = vmatprep.subr.bf16.mxu0 0
        %990 = vmatpush1.bf16.msra.mxu0 0
        %991 = vmatprep.subr.bf16.mxu0 0
        %992 = vmatpush1.bf16.msra.mxu0 0
        %993 = vmatprep.subr.bf16.mxu0 0
        %994 = vmatpush1.bf16.msra.mxu0 0
        %995 = vmatprep.mubr.bf16.mxu0 0
        %996 = vmatmul.mubr.bf16.gmra.mrb[0].mxu0 %v958
        %v997 = vpop.f32.mrb[0].mxu0
        %v998 = vadd.f32 0.0, %v997
        %v999 = vpop.f32.mrb[0].mxu0
        %v1000 = vpop.f32.mrb[0].mxu0
        %v1001 = vpop.f32.mrb[0].mxu0
        %1002 = vdwg.mxu0
        %v1003 = vmul.f32 %v998, %v953
        %1004 = vrot.lane.b32.xlu0 %v672, 104
        %v1005 = vpop.permute.xlu0 %1004
        %1006 = vrot.lane.b32.xlu0 %v672, 72
        %v1007 = vpop.permute.xlu0 %1006
        %v1009 = vsel %vm676, %v1005, 0
        %v1012 = vsel %vm676, %v1007, 0
        %1014 = vmatprep.subr.bf16.mxu0 0
        %1015 = vmatpush1.bf16.xpose.msra.mxu0 %v1012
        %1016 = vmatprep.subr.bf16.mxu0 0
        %1017 = vmatpush1.bf16.xpose.msra.mxu0 0
        %1018 = vmatprep.subr.bf16.mxu0 0
        %1019 = vmatpush1.bf16.xpose.msra.mxu0 0
        %1020 = vmatprep.subr.bf16.mxu0 0
        %1021 = vmatpush1.bf16.xpose.msra.mxu0 0
        %1022 = vmatprep.subr.bf16.mxu0 0
        %1023 = vmatpush1.bf16.xpose.msra.mxu0 0
        %1024 = vmatprep.subr.bf16.mxu0 0
        %1025 = vmatpush1.bf16.xpose.msra.mxu0 0
        %1026 = vmatprep.subr.bf16.mxu0 0
        %1027 = vmatpush1.bf16.xpose.msra.mxu0 0
        %1028 = vmatprep.subr.bf16.mxu0 0
        %1029 = vmatpush1.bf16.xpose.msra.mxu0 0
        %1030 = vmatprep.subr.bf16.mxu0 0
        %1031 = vmatpush1.bf16.xpose.msra.mxu0 0
        %1032 = vmatprep.subr.bf16.mxu0 0
        %1033 = vmatpush1.bf16.xpose.msra.mxu0 0
        %1034 = vmatprep.subr.bf16.mxu0 0
        %1035 = vmatpush1.bf16.xpose.msra.mxu0 0
        %1036 = vmatprep.subr.bf16.mxu0 0
        %1037 = vmatpush1.bf16.xpose.msra.mxu0 0
        %1038 = vmatprep.subr.bf16.mxu0 0
        %1039 = vmatpush1.bf16.xpose.msra.mxu0 0
        %1040 = vmatprep.subr.bf16.mxu0 0
        %1041 = vmatpush1.bf16.xpose.msra.mxu0 0
        %1042 = vmatprep.subr.bf16.mxu0 0
        %1043 = vmatpush1.bf16.xpose.msra.mxu0 0
        %1044 = vmatprep.subr.bf16.mxu0 0
        %1045 = vmatpush1.bf16.xpose.msra.mxu0 0
        %1046 = vmatprep.mubr.bf16.mxu0 0
        %1047 = vmatmul.mubr.bf16.gmra.mrb[0].mxu0 %v1009
        %v1048 = vpop.f32.mrb[0].mxu0
        %v1049 = vadd.f32 0.0, %v1048
        %v1050 = vpop.f32.mrb[0].mxu0
        %v1051 = vpop.f32.mrb[0].mxu0
        %v1052 = vpop.f32.mrb[0].mxu0
        %1053 = vdwg.mxu0
        %v1054 = vsel %vm676, %v1049, -inf
        %1055 = vmax.xlane.f32.xlu0 %v1054
        %v1056 = vpop.xlane.xlu0 %1055
        %v1057 = vsub.f32 %v1049, %v1056
        %v1058 = vmul.f32 %v1057, 1.442695
        %v1059 = vpow.pop %v1058
        %v1060 = vsel %vm676, %v1059, 0.0
        %1061 = vadd.xlane.f32.xlu0 %v1060
        %v1062 = vpop.xlane.xlu0 %1061
        %v1063 = vrcp.pop %v1062
        %v1064 = vpack.c.bf16 %v1059, %v1059
        %1065 = vrot.lane.b32.xlu0 %v672, 40
        %v1066 = vpop.permute.xlu0 %1065
        %v1068 = vsel %vm676, %v1064, 0
        %v1071 = vsel %vm739, %v1066, 0
        %1073 = vmatprep.subr.bf16.mxu0 0
        %1074 = vmatpush1.bf16.msra.mxu0 %v1071
        %1075 = vmatprep.subr.bf16.mxu0 0
        %1076 = vmatpush1.bf16.msra.mxu0 0
        %1077 = vmatprep.subr.bf16.mxu0 0
        %1078 = vmatpush1.bf16.msra.mxu0 0
        %1079 = vmatprep.subr.bf16.mxu0 0
        %1080 = vmatpush1.bf16.msra.mxu0 0
        %1081 = vmatprep.subr.bf16.mxu0 0
        %1082 = vmatpush1.bf16.msra.mxu0 0
        %1083 = vmatprep.subr.bf16.mxu0 0
        %1084 = vmatpush1.bf16.msra.mxu0 0
        %1085 = vmatprep.subr.bf16.mxu0 0
        %1086 = vmatpush1.bf16.msra.mxu0 0
        %1087 = vmatprep.subr.bf16.mxu0 0
        %1088 = vmatpush1.bf16.msra.mxu0 0
        %1089 = vmatprep.subr.bf16.mxu0 0
        %1090 = vmatpush1.bf16.msra.mxu0 0
        %1091 = vmatprep.subr.bf16.mxu0 0
        %1092 = vmatpush1.bf16.msra.mxu0 0
        %1093 = vmatprep.subr.bf16.mxu0 0
        %1094 = vmatpush1.bf16.msra.mxu0 0
        %1095 = vmatprep.subr.bf16.mxu0 0
        %1096 = vmatpush1.bf16.msra.mxu0 0
        %1097 = vmatprep.subr.bf16.mxu0 0
        %1098 = vmatpush1.bf16.msra.mxu0 0
        %1099 = vmatprep.subr.bf16.mxu0 0
        %1100 = vmatpush1.bf16.msra.mxu0 0
        %1101 = vmatprep.subr.bf16.mxu0 0
        %1102 = vmatpush1.bf16.msra.mxu0 0
        %1103 = vmatprep.subr.bf16.mxu0 0
        %1104 = vmatpush1.bf16.msra.mxu0 0
        %1105 = vmatprep.mubr.bf16.mxu0 0
        %1106 = vmatmul.mubr.bf16.gmra.mrb[0].mxu0 %v1068
        %v1107 = vpop.f32.mrb[0].mxu0
        %v1108 = vadd.f32 0.0, %v1107
        %v1109 = vpop.f32.mrb[0].mxu0
        %v1110 = vpop.f32.mrb[0].mxu0
        %v1111 = vpop.f32.mrb[0].mxu0
        %1112 = vdwg.mxu0
        %v1113 = vmul.f32 %v1108, %v1063
        %1115 = vrot.lane.b32.xlu0 %v893, 8
        %v1116 = vpop.permute.xlu0 %1115
        %1119 = vrot.lane.b32.xlu0 %v1003, 16
        %v1120 = vpop.permute.xlu0 %1119
        %1123 = vrot.lane.b32.xlu0 %v1113, 24
        %v1124 = vpop.permute.xlu0 %1123
        %v1126 = vsel %vm676, %v783, %v1116
        %v1127 = vsel %vm557, %v1126, %v1120
        %vm1128 = vcmask 195584
        %v1129 = vsel %vm1128, %v1127, %v1124
        %v1130 = vpack.c.bf16 %v1129, %v1129
        %v1131 = vld [vmem:[%s502] sm:$0xf]
        %v1132 = vld [vmem:[%s502 + $0x4] sm:$0xf]
        %v1133 = vld [vmem:[%s502 + $0x8] sm:$0xf]
        %v1134 = vld [vmem:[%s502 + $0xc] sm:$0xf]
        %v1135 = vld [vmem:[%s505] sm:$0x1]
        %v1137 = vlaneseq
        %v1138 = vshrl.u32 %v1137, 7
        %v1139 = vsub.s32 0, %v1138
        %v1140 = vrot.slane %v1135, %v1139
        %v1146 = vunpack.c.l.b16 %v1131
        %v1147 = vunpack.c.l.b16 %v1132
        %v1148 = vunpack.c.l.b16 %v1133
        %v1149 = vunpack.c.l.b16 %v1134
        %v1150 = vpack.c.b16 %v1147, %v1146
        %v1151 = vpack.c.b16 %v1149, %v1148
        %v1155 = vsel %vm628, %v1130, 0
        %1157 = vmatprep.subr.bf16.mxu0 0
        %1158 = vmatpush1.bf16.msra.mxu0 %v1150
        %1159 = vmatprep.subr.bf16.mxu0 0
        %1160 = vmatpush1.bf16.msra.mxu0 %v1151
        %1161 = vmatprep.subr.bf16.mxu0 0
        %1162 = vmatpush1.bf16.msra.mxu0 0
        %1163 = vmatprep.subr.bf16.mxu0 0
        %1164 = vmatpush1.bf16.msra.mxu0 0
        %1165 = vmatprep.subr.bf16.mxu0 0
        %1166 = vmatpush1.bf16.msra.mxu0 0
        %1167 = vmatprep.subr.bf16.mxu0 0
        %1168 = vmatpush1.bf16.msra.mxu0 0
        %1169 = vmatprep.subr.bf16.mxu0 0
        %1170 = vmatpush1.bf16.msra.mxu0 0
        %1171 = vmatprep.subr.bf16.mxu0 0
        %1172 = vmatpush1.bf16.msra.mxu0 0
        %1173 = vmatprep.subr.bf16.mxu0 0
        %1174 = vmatpush1.bf16.msra.mxu0 0
        %1175 = vmatprep.subr.bf16.mxu0 0
        %1176 = vmatpush1.bf16.msra.mxu0 0
        %1177 = vmatprep.subr.bf16.mxu0 0
        %1178 = vmatpush1.bf16.msra.mxu0 0
        %1179 = vmatprep.subr.bf16.mxu0 0
        %1180 = vmatpush1.bf16.msra.mxu0 0
        %1181 = vmatprep.subr.bf16.mxu0 0
        %1182 = vmatpush1.bf16.msra.mxu0 0
        %1183 = vmatprep.subr.bf16.mxu0 0
        %1184 = vmatpush1.bf16.msra.mxu0 0
        %1185 = vmatprep.subr.bf16.mxu0 0
        %1186 = vmatpush1.bf16.msra.mxu0 0
        %1187 = vmatprep.subr.bf16.mxu0 0
        %1188 = vmatpush1.bf16.msra.mxu0 0
        %1189 = vmatprep.mubr.bf16.mxu0 0
        %1190 = vmatmul.mubr.bf16.gmra.mrb[0].mxu0 %v1155
        %v1191 = vpop.f32.mrb[0].mxu0
        %v1192 = vadd.f32 %v1140, %v1191
        %v1193 = vpop.f32.mrb[0].mxu0
        %v1194 = vpop.f32.mrb[0].mxu0
        %v1195 = vpop.f32.mrb[0].mxu0
        %1196 = vdwg.mxu0
        %v1197 = vpack.c.bf16 %v1192, %v1192
        %v1198 = vld [vmem:[%s510] sm:$0xf]
        %v1199 = vld [vmem:[%s510 + $0x4] sm:$0xf]
        %v1200 = vld [vmem:[%s510 + $0x8] sm:$0xf]
        %v1201 = vld [vmem:[%s510 + $0xc] sm:$0xf]
        %v1202 = vld [vmem:[%s513] sm:$0x1]
        %v1204 = vlaneseq
        %v1205 = vshrl.u32 %v1204, 7
        %v1206 = vsub.s32 0, %v1205
        %v1207 = vrot.slane %v1202, %v1206
        %v1213 = vunpack.c.l.b16 %v1198
        %v1214 = vunpack.c.l.b16 %v1199
        %v1215 = vunpack.c.l.b16 %v1200
        %v1216 = vunpack.c.l.b16 %v1201
        %v1217 = vpack.c.b16 %v1214, %v1213
        %v1218 = vpack.c.b16 %v1216, %v1215
        %v1222 = vsel %vm628, %v1197, 0
        %1224 = vmatprep.subr.bf16.mxu0 0
        %1225 = vmatpush1.bf16.msra.mxu0 %v1217
        %1226 = vmatprep.subr.bf16.mxu0 0
        %1227 = vmatpush1.bf16.msra.mxu0 %v1218
        %1228 = vmatprep.subr.bf16.mxu0 0
        %1229 = vmatpush1.bf16.msra.mxu0 0
        %1230 = vmatprep.subr.bf16.mxu0 0
        %1231 = vmatpush1.bf16.msra.mxu0 0
        %1232 = vmatprep.subr.bf16.mxu0 0
        %1233 = vmatpush1.bf16.msra.mxu0 0
        %1234 = vmatprep.subr.bf16.mxu0 0
        %1235 = vmatpush1.bf16.msra.mxu0 0
        %1236 = vmatprep.subr.bf16.mxu0 0
        %1237 = vmatpush1.bf16.msra.mxu0 0
        %1238 = vmatprep.subr.bf16.mxu0 0
        %1239 = vmatpush1.bf16.msra.mxu0 0
        %1240 = vmatprep.subr.bf16.mxu0 0
        %1241 = vmatpush1.bf16.msra.mxu0 0
        %1242 = vmatprep.subr.bf16.mxu0 0
        %1243 = vmatpush1.bf16.msra.mxu0 0
        %1244 = vmatprep.subr.bf16.mxu0 0
        %1245 = vmatpush1.bf16.msra.mxu0 0
        %1246 = vmatprep.subr.bf16.mxu0 0
        %1247 = vmatpush1.bf16.msra.mxu0 0
        %1248 = vmatprep.subr.bf16.mxu0 0
        %1249 = vmatpush1.bf16.msra.mxu0 0
        %1250 = vmatprep.subr.bf16.mxu0 0
        %1251 = vmatpush1.bf16.msra.mxu0 0
        %1252 = vmatprep.subr.bf16.mxu0 0
        %1253 = vmatpush1.bf16.msra.mxu0 0
        %1254 = vmatprep.subr.bf16.mxu0 0
        %1255 = vmatpush1.bf16.msra.mxu0 0
        %1256 = vmatprep.mubr.bf16.mxu0 0
        %1257 = vmatmul.mubr.bf16.gmra.mrb[0].mxu0 %v1222
        %v1258 = vpop.f32.mrb[0].mxu0
        %v1259 = vadd.f32 %v1207, %v1258
        %v1260 = vpop.f32.mrb[0].mxu0
        %v1261 = vpop.f32.mrb[0].mxu0
        %v1262 = vpop.f32.mrb[0].mxu0
        %1263 = vdwg.mxu0
        %v1264 = vmax.f32 %v1259, 0.0
        %p1265 = scmp.lt.s32.totalorder %s29, 1
        // Predicated region
        $region65: #{contextual_aggregator.1} parent=59 // pred_check
          %p1266 = pneg %p1265
        $region66: #{contextual_aggregator.1} parent=59 // pred_check_branch
          %1268 = sbr.rel (%p1266) target = $region68
        $region67: #{contextual_aggregator.1} parent=59 // pred_region
          %v1269 = vpack.c.bf16 %v1264, %v1264
          %v1270 = vld [vmem:[%s518] sm:$0xf]
          %v1271 = vld [vmem:[%s518 + $0x4] sm:$0xf]
          %v1272 = vld [vmem:[%s518 + $0x8] sm:$0xf]
          %v1273 = vld [vmem:[%s518 + $0xc] sm:$0xf]
          %v1274 = vld [vmem:[%s518 + $0x10] sm:$0xf]
          %v1275 = vld [vmem:[%s518 + $0x14] sm:$0xf]
          %v1276 = vld [vmem:[%s518 + $0x18] sm:$0xf]
          %v1277 = vld [vmem:[%s518 + $0x1c] sm:$0xf]
          %v1278 = vld [vmem:[%s521] sm:$0x1]
          %v1280 = vlaneseq
          %v1281 = vshrl.u32 %v1280, 7
          %v1282 = vsub.s32 0, %v1281
          %v1283 = vrot.slane %v1278, %v1282
          %v1293 = vunpack.c.l.b16 %v1270
          %v1294 = vunpack.c.l.b16 %v1271
          %v1295 = vunpack.c.l.b16 %v1272
          %v1296 = vunpack.c.l.b16 %v1273
          %v1297 = vunpack.c.l.b16 %v1274
          %v1298 = vunpack.c.l.b16 %v1275
          %v1299 = vunpack.c.l.b16 %v1276
          %v1300 = vunpack.c.l.b16 %v1277
          %v1301 = vpack.c.b16 %v1294, %v1293
          %v1302 = vpack.c.b16 %v1296, %v1295
          %v1303 = vpack.c.b16 %v1298, %v1297
          %v1304 = vpack.c.b16 %v1300, %v1299
          %vm1309 = vcmask 523264
          %v1311 = vsel %vm1309, %v1269, 0
          %1313 = vmatprep.subr.bf16.mxu0 0
          %1314 = vmatpush1.bf16.msra.mxu0 %v1301
          %1315 = vmatprep.subr.bf16.mxu0 0
          %1316 = vmatpush1.bf16.msra.mxu0 %v1302
          %1317 = vmatprep.subr.bf16.mxu0 0
          %1318 = vmatpush1.bf16.msra.mxu0 %v1303
          %1319 = vmatprep.subr.bf16.mxu0 0
          %1320 = vmatpush1.bf16.msra.mxu0 %v1304
          %1321 = vmatprep.subr.bf16.mxu0 0
          %1322 = vmatpush1.bf16.msra.mxu0 0
          %1323 = vmatprep.subr.bf16.mxu0 0
          %1324 = vmatpush1.bf16.msra.mxu0 0
          %1325 = vmatprep.subr.bf16.mxu0 0
          %1326 = vmatpush1.bf16.msra.mxu0 0
          %1327 = vmatprep.subr.bf16.mxu0 0
          %1328 = vmatpush1.bf16.msra.mxu0 0
          %1329 = vmatprep.subr.bf16.mxu0 0
          %1330 = vmatpush1.bf16.msra.mxu0 0
          %1331 = vmatprep.subr.bf16.mxu0 0
          %1332 = vmatpush1.bf16.msra.mxu0 0
          %1333 = vmatprep.subr.bf16.mxu0 0
          %1334 = vmatpush1.bf16.msra.mxu0 0
          %1335 = vmatprep.subr.bf16.mxu0 0
          %1336 = vmatpush1.bf16.msra.mxu0 0
          %1337 = vmatprep.subr.bf16.mxu0 0
          %1338 = vmatpush1.bf16.msra.mxu0 0
          %1339 = vmatprep.subr.bf16.mxu0 0
          %1340 = vmatpush1.bf16.msra.mxu0 0
          %1341 = vmatprep.subr.bf16.mxu0 0
          %1342 = vmatpush1.bf16.msra.mxu0 0
          %1343 = vmatprep.subr.bf16.mxu0 0
          %1344 = vmatpush1.bf16.msra.mxu0 0
          %1345 = vmatprep.mubr.bf16.mxu0 0
          %1346 = vmatmul.mubr.bf16.gmra.mrb[0].mxu0 %v1311
          %v1347 = vpop.f32.mrb[0].mxu0
          %v1348 = vadd.f32 %v1283, %v1347
          %v1349 = vpop.f32.mrb[0].mxu0
          %v1350 = vpop.f32.mrb[0].mxu0
          %v1351 = vpop.f32.mrb[0].mxu0
          %1352 = vdwg.mxu0
          %v1353 = vpack.c.bf16 %v1348, %v1348
          %vm1354 = vcmask 257024
          %1355 = vst.msk [vmem:[#allocation2] sm:$0xf] %vm1354, %v1353
        $region68: #{contextual_aggregator.1} parent=59 // pred_fallthru
          _
        %p1356 = scmp.eq.s32.totalorder %s29, 1
        // Predicated region
        $region69: #{contextual_aggregator.1} parent=59 // pred_check
          %p1357 = pneg %p1356
        $region70: #{contextual_aggregator.1} parent=59 // pred_check_branch
          %1359 = sbr.rel (%p1357) target = $region72
        $region71: #{contextual_aggregator.1} parent=59 // pred_region
          %vm1360 = vcmask 523264
          %v1361 = vsel %vm1360, %v1264, 0.0
          %v1362 = vrot.slane %v1361, 4
          %v1363 = vadd.f32 %v1361, %v1362
          %v1364 = vrot.slane %v1363, 2
          %v1365 = vadd.f32 %v1363, %v1364
          %v1366 = vrot.slane %v1365, 1
          %v1367 = vadd.f32 %v1365, %v1366
          %v1368 = vrcp.pop 8.0
          %v1369 = vmul.f32 %v1367, %v1368
          %v1370 = vpack.c.bf16 %v1369, %v1369
          %v1371 = vld [vmem:[%s518] sm:$0xf]
          %v1372 = vld [vmem:[%s518 + $0x4] sm:$0xf]
          %v1373 = vld [vmem:[%s518 + $0x8] sm:$0xf]
          %v1374 = vld [vmem:[%s518 + $0xc] sm:$0xf]
          %v1375 = vld [vmem:[%s518 + $0x10] sm:$0xf]
          %v1376 = vld [vmem:[%s518 + $0x14] sm:$0xf]
          %v1377 = vld [vmem:[%s518 + $0x18] sm:$0xf]
          %v1378 = vld [vmem:[%s518 + $0x1c] sm:$0xf]
          %v1379 = vld [vmem:[%s521] sm:$0x1]
          %v1388 = vunpack.c.l.b16 %v1371
          %v1389 = vunpack.c.l.b16 %v1372
          %v1390 = vunpack.c.l.b16 %v1373
          %v1391 = vunpack.c.l.b16 %v1374
          %v1392 = vunpack.c.l.b16 %v1375
          %v1393 = vunpack.c.l.b16 %v1376
          %v1394 = vunpack.c.l.b16 %v1377
          %v1395 = vunpack.c.l.b16 %v1378
          %v1396 = vpack.c.b16 %v1389, %v1388
          %v1397 = vpack.c.b16 %v1391, %v1390
          %v1398 = vpack.c.b16 %v1393, %v1392
          %v1399 = vpack.c.b16 %v1395, %v1394
          %v1405 = vsel %vm1360, %v1370, 0
          %1407 = vmatprep.subr.bf16.mxu0 0
          %1408 = vmatpush1.bf16.msra.mxu0 %v1396
          %1409 = vmatprep.subr.bf16.mxu0 0
          %1410 = vmatpush1.bf16.msra.mxu0 %v1397
          %1411 = vmatprep.subr.bf16.mxu0 0
          %1412 = vmatpush1.bf16.msra.mxu0 %v1398
          %1413 = vmatprep.subr.bf16.mxu0 0
          %1414 = vmatpush1.bf16.msra.mxu0 %v1399
          %1415 = vmatprep.subr.bf16.mxu0 0
          %1416 = vmatpush1.bf16.msra.mxu0 0
          %1417 = vmatprep.subr.bf16.mxu0 0
          %1418 = vmatpush1.bf16.msra.mxu0 0
          %1419 = vmatprep.subr.bf16.mxu0 0
          %1420 = vmatpush1.bf16.msra.mxu0 0
          %1421 = vmatprep.subr.bf16.mxu0 0
          %1422 = vmatpush1.bf16.msra.mxu0 0
          %1423 = vmatprep.subr.bf16.mxu0 0
          %1424 = vmatpush1.bf16.msra.mxu0 0
          %1425 = vmatprep.subr.bf16.mxu0 0
          %1426 = vmatpush1.bf16.msra.mxu0 0
          %1427 = vmatprep.subr.bf16.mxu0 0
          %1428 = vmatpush1.bf16.msra.mxu0 0
          %1429 = vmatprep.subr.bf16.mxu0 0
          %1430 = vmatpush1.bf16.msra.mxu0 0
          %1431 = vmatprep.subr.bf16.mxu0 0
          %1432 = vmatpush1.bf16.msra.mxu0 0
          %1433 = vmatprep.subr.bf16.mxu0 0
          %1434 = vmatpush1.bf16.msra.mxu0 0
          %1435 = vmatprep.subr.bf16.mxu0 0
          %1436 = vmatpush1.bf16.msra.mxu0 0
          %1437 = vmatprep.subr.bf16.mxu0 0
          %1438 = vmatpush1.bf16.msra.mxu0 0
          %1439 = vmatprep.mubr.bf16.mxu0 0
          %1440 = vmatmul.mubr.bf16.gmra.mrb[0].mxu0 %v1405
          %v1441 = vpop.f32.mrb[0].mxu0
          %v1442 = vadd.f32 %v1379, %v1441
          %v1443 = vpop.f32.mrb[0].mxu0
          %v1444 = vpop.f32.mrb[0].mxu0
          %v1445 = vpop.f32.mrb[0].mxu0
          %1446 = vdwg.mxu0
          %vm1447 = vcmask 253952
          %1448 = vst.msk [vmem:[%s480] sm:$0x1] %vm1447, %v1442
        $region72: #{contextual_aggregator.1} parent=59 // pred_fallthru
          _
        %s1449 = sand.u32 %s304, 1
        %s1450 = scalar_lea.sflag [#allocation5], %s1449
        %s1451 = sand.u32 %s304, 1
        %s1452 = scalar_lea.vmem [#allocation4], %s1451
        // Predicated region
        $region73: #{contextual_aggregator.1} parent=59 // pred_check
          %p1453 = pneg %p314
        $region74: #{contextual_aggregator.1} parent=59 // pred_check_branch
          %1455 = sbr.rel (%p1453) target = $region76
        $region75: #{contextual_aggregator.1} parent=59 // pred_region
          %s1457 = ssub.s32 16, 16
          %1458 = vsyncadd %s1450, %s1457
          %s1459 = smul.addr %s28, 16
          %s1460 = scalar_lea.hbm %s10, %s1459
          %s1462 = sshll.u32 %s1452, 4
          %s1463 = int_to_ptr.vmem [resolvable:$true] %s1462
          %1465 = dma.vmem_to_hbm [thread:$0]  %s1463, 16, %s1460, %s1450
        $region76: #{contextual_aggregator.1} parent=59 // pred_fallthru
          _
      $region60: #{contextual_aggregator.1} parent=5 // pred_fallthru
        _
      %p1466 = scmp.le.s32.totalorder 2, %s19
      // Predicated region
      $region77: #{contextual_aggregator.1} parent=5 // pred_check
        %p1467 = pneg %p1466
      $region78: #{contextual_aggregator.1} parent=5 // pred_check_branch
        %1469 = sbr.rel (%p1467) target = $region80
      $region79: #{contextual_aggregator.1} parent=5 // pred_region
        %s1470 = ssub.s32 %s19, 2
        // Predicated region
        $region81: #{contextual_aggregator.1} parent=79 // pred_check
          %p1471 = pneg %p320
        $region82: #{contextual_aggregator.1} parent=79 // pred_check_branch
          %1473 = sbr.rel (%p1471) target = $region84
        $region83: #{contextual_aggregator.1} parent=79 // pred_region
          %s1474 = sand.u32 %s305, 1
          %s1475 = scalar_lea.sflag [#allocation5], %s1474
          %s1476 = sand.u32 %s305, 1
          %s1477 = scalar_lea.vmem [#allocation4], %s1476
          %1478 = dma.done %s1475, 16
        $region84: #{contextual_aggregator.1} parent=79 // pred_fallthru
          _
      $region80: #{contextual_aggregator.1} parent=5 // pred_fallthru
        _
    $region6: #{contextual_aggregator.1} parent=1 // loop_footer
      %s23 = sadd.s32 1, %s19
    $region7: #{contextual_aggregator.1} parent=1 // loop_footer_branch
      %18 = sbr.rel target = $region3
    $region8: #{contextual_aggregator.1} parent=1 // loop_exit
      _
    %1479 = vsyncpa [#allocation5], 1
    %s1480 = scalar_lea.sflag [#allocation5], 1
    %1481 = vsyncpa %s1480, 1

</llo_original>
